<compile_context>
chip_gen: v7x
topology: tpu7x:2x2x1
jax: 0.10.0
libtpu: 0.0.40
codegen_flags: <defaults>
</compile_context>

<pallas_src>
import jax
import jax.numpy as jnp
from jax.experimental import pallas as pl
from jax.experimental.pallas import tpu as pltpu


# ----------------------------------------------------------------------------
# Pass 1: 3x3 conv (stride 1, pad 1) + bias as ONE im2col matmul per
#         (sample, row-tile), fused with masked per-tile BN stat partials.
# grid = (N, H // TH), both axes "parallel".
# ----------------------------------------------------------------------------
def conv_stats_kernel(x_ref, w_ref, b_ref, mask_ref, y_ref, sum_ref, sumsq_ref,
                      col_ref):
    # x_ref   : (1, 1, Cin, Lpad) f32   flattened padded row tile, Lpad =
    #           (TH+2)*Wp + 2 (one guard element each end so every tap is a
    #           plain static lane-offset window).
    # w_ref   : (Cout, 9*Cin) bf16      tap-major / channel-minor 3x3 weights.
    # b_ref   : (Cout, 1) f32
    # mask_ref: (1, Ltile) f32          1.0 on valid columns (BN stats only).
    # y_ref   : (1, Cout, TH*W) bf16    de-padded conv output, spatial on lanes.
    # sum_ref, sumsq_ref : (1, 1, Cout, 1) f32   per-tile BN stat partials.
    # col_ref : VMEM (9*Cin, Ltile)     im2col matrix, spatial on lanes.
    Cin = x_ref.shape[2]
    Lpad = x_ref.shape[3]
    Ltile = col_ref.shape[1]
    Wp = (Lpad - 2 - Ltile) // 2      # padded image width
    TH = Ltile // Wp                  # output rows in this tile
    W = Wp - 2                        # valid output columns per row

    # im2col build: each of the 9 taps is ONE contiguous window of the flat
    # tile (static lane-offset load, no reshape), stored lane-dense into its
    # (Cin, Ltile) slab of col.
    for kh in range(3):
        for kw in range(3):
            tap = kh * 3 + kw
            off = kh * Wp + kw
            win = x_ref[0, 0, :, off:off + Ltile]            # (Cin, Ltile)
            col_ref[tap * Cin:(tap + 1) * Cin, :] = win.astype(col_ref.dtype)

    # Single MXU matmul, K = 9*Cin, plain contraction (no transposed operand);
    # result (Cout, Ltile) keeps the big spatial axis on lanes.
    colv = col_ref[...].astype(w_ref.dtype)                  # bf16 operands
    acc = jax.lax.dot_general(
        w_ref[...], colv,
        dimension_numbers=(((1,), (0,)), ((), ())),
        preferred_element_type=jnp.float32)                  # (Cout, Ltile) f32
    acc = acc + b_ref[...]                                   # (Cout,1) bcast

    # De-padded store: drop the left/right pad column of every row, so garbage
    # columns never leave the kernel.
    for r in range(TH):
        y_ref[0, :, r * W:(r + 1) * W] = (
            acc[:, r * Wp + 1:r * Wp + 1 + W].astype(y_ref.dtype))

    # Per-tile BN stat partials from the f32 accumulator (pad columns masked);
    # the tiny (N, n_t) reduction happens in XLA so this grid stays parallel.
    masked = acc * mask_ref[...]
    sum_ref[0, 0] = jnp.sum(masked, axis=1, keepdims=True)           # (Cout,1)
    sumsq_ref[0, 0] = jnp.sum(masked * acc, axis=1, keepdims=True)   # (Cout,1)


# ----------------------------------------------------------------------------
# Pass 2: BatchNorm affine (precomputed scale/shift) + ReLU.
# grid = (N // TB, HW // TS), both "parallel"; lane-dense blocks; bf16 in,
# f32 out (so no aliasing — and aliasing would not merge VMEM buffers anyway).
# ----------------------------------------------------------------------------
def bn_relu_kernel(y_ref, scale_ref, shift_ref, o_ref):
    y = y_ref[...].astype(jnp.float32)
    o_ref[...] = jnp.maximum(
        y * scale_ref[...] + shift_ref[...], 0.0).astype(o_ref.dtype)


# ----------------------------------------------------------------------------
# Tile / VMEM-budget pickers (generation aware).
# ----------------------------------------------------------------------------
def _vmem_budget_bytes():
    """Live-VMEM target with headroom: ~45 MiB on v7x, ~90 MiB on v5e/v6e."""
    try:
        cap = pltpu.get_tpu_info().vmem_capacity_bytes
    except Exception:
        cap = 64 * 1024 * 1024          # assume smallest (v7x) if unknown
    return max(32 * 1024 * 1024, min(int(0.70 * cap), 100 * 1024 * 1024))


def _pick_row_tile(H, W, Cin, Cout, col_bytes, budget):
    """Largest row-tile TH (dividing H, lane-aligned) whose working set fits."""
    Wp = W + 2
    valid = [th for th in range(H, 0, -1)
             if H % th == 0 and (th == H or (th * W) % 128 == 0)]
    for th in valid:
        ltile = th * Wp
        lpad = (th + 2) * Wp + 2
        need = (2 * Cin * lpad * 4            # input block (f32), double buffered
                + 9 * Cin * ltile * col_bytes  # col scratch
                + 2 * Cout * th * W * 2        # y block (bf16), double buffered
                + Cout * ltile * 4             # f32 accumulator
                + 2 * Cout * 9 * Cin * 2)      # resident weights
        if int(need * 1.3) <= budget:          # fudge for lane/sublane padding
            return th
    return valid[-1]                           # best effort


def _pick_pass2_tiles(N, Cout, HW, budget):
    """(TB, TS): 2x bf16-in + 2x f32-out blocks live at once, kept small."""
    per_elem = 2 * 2 + 2 * 4
    limit = min(16 * 1024 * 1024, budget // 3)
    for tb in range(N, 0, -1):
        if N % tb == 0 and tb * Cout * HW * per_elem <= limit:
            return tb, HW
    for ts in range(HW, 0, -1):
        if HW % ts == 0 and (ts == HW or ts % 128 == 0) and \
                Cout * ts * per_elem <= limit:
            return 1, ts
    return 1, HW


# ----------------------------------------------------------------------------
# Forward wrapper.
# ----------------------------------------------------------------------------
def deform_conv_forward(x_nchw, w_oihw, b, gamma, beta, eps=1e-5):
    """conv3x3(pad=1, bias) -> BatchNorm2d(train-mode batch stats) -> ReLU."""
    N, Cin, H, W = x_nchw.shape
    Cout = w_oihw.shape[0]
    HW = H * W
    Wp = W + 2

    budget = _vmem_budget_bytes()
    # bf16 col scratch when Cin is packing-aligned; f32 otherwise (tiny Cin).
    col_dtype = jnp.bfloat16 if (Cin % 16 == 0) else jnp.float32
    col_bytes = 2 if col_dtype == jnp.bfloat16 else 4
    TH = _pick_row_tile(H, W, Cin, Cout, col_bytes, budget)
    n_t = H // TH
    Ltile = TH * Wp
    Lpad = (TH + 2) * Wp + 2

    # Host-side layout: pad, build (overlapping) row tiles, flatten spatially,
    # add +-1 guard elements so every tap is a static in-bounds window.
    xp = jnp.pad(x_nchw.astype(jnp.float32),
                 ((0, 0), (0, 0), (1, 1), (1, 1)))          # (N, Cin, H+2, Wp)
    if n_t == 1:
        xt = xp.reshape(N, 1, Cin, (H + 2) * Wp)
    else:
        rows = jnp.arange(n_t)[:, None] * TH + jnp.arange(TH + 2)[None, :]
        xt = jnp.transpose(xp[:, :, rows, :], (0, 2, 1, 3, 4))
        xt = xt.reshape(N, n_t, Cin, (TH + 2) * Wp)
    xt = jnp.pad(xt, ((0, 0), (0, 0), (0, 0), (1, 1)))      # guard elements

    # (Cout, Cin, 3, 3) -> (Cout, 9*Cin), tap-major / channel-minor, bf16 MXU
    # operands (f32 accumulate).
    w9 = jnp.transpose(w_oihw, (0, 2, 3, 1)).reshape(Cout, 9 * Cin)
    w9 = w9.astype(jnp.bfloat16)
    b_col = b.reshape(Cout, 1).astype(jnp.float32)

    # 0/1 mask over the padded-width tile (BN statistics only).
    col_j = jnp.arange(Ltile) % Wp
    mask = ((col_j >= 1) & (col_j <= W)).astype(jnp.float32).reshape(1, Ltile)

    y, psum, psumsq = pl.pallas_call(
        conv_stats_kernel,
        out_shape=(
            jax.ShapeDtypeStruct((N, Cout, HW), jnp.bfloat16),
            jax.ShapeDtypeStruct((N, n_t, Cout, 1), jnp.float32),
            jax.ShapeDtypeStruct((N, n_t, Cout, 1), jnp.float32),
        ),
        grid=(N, n_t),
        in_specs=[
            pl.BlockSpec((1, 1, Cin, Lpad), lambda n, t: (n, t, 0, 0)),
            pl.BlockSpec((Cout, 9 * Cin), lambda n, t: (0, 0)),   # resident
            pl.BlockSpec((Cout, 1), lambda n, t: (0, 0)),
            pl.BlockSpec((1, Ltile), lambda n, t: (0, 0)),
        ],
        out_specs=(
            pl.BlockSpec((1, Cout, TH * W), lambda n, t: (n, 0, t)),
            pl.BlockSpec((1, 1, Cout, 1), lambda n, t: (n, t, 0, 0)),
            pl.BlockSpec((1, 1, Cout, 1), lambda n, t: (n, t, 0, 0)),
        ),
        scratch_shapes=[pltpu.VMEM((9 * Cin, Ltile), col_dtype)],
        compiler_params=pltpu.CompilerParams(
            dimension_semantics=("parallel", "parallel"),
            vmem_limit_bytes=budget),
    )(xt, w9, b_col, mask)

    # BN training-mode statistics over (N, H, W); biased variance, as in
    # torch.nn.BatchNorm2d normalization. Tiny reduction done in XLA.
    count = jnp.float32(N * HW)
    ch_sum = jnp.sum(psum, axis=(0, 1))[:, 0]                # (Cout,)
    ch_sumsq = jnp.sum(psumsq, axis=(0, 1))[:, 0]            # (Cout,)
    mean = ch_sum / count
    var = jnp.maximum(ch_sumsq / count - mean * mean, 0.0)   # clamp cancellation
    inv_std = jax.lax.rsqrt(var + eps)
    g32 = gamma.astype(jnp.float32)
    scale = (g32 * inv_std).reshape(Cout, 1)
    shift = (beta.astype(jnp.float32) - mean * g32 * inv_std).reshape(Cout, 1)

    TB, TS = _pick_pass2_tiles(N, Cout, HW, budget)
    out = pl.pallas_call(
        bn_relu_kernel,
        out_shape=jax.ShapeDtypeStruct((N, Cout, HW), jnp.float32),
        grid=(N // TB, HW // TS),
        in_specs=[
            pl.BlockSpec((TB, Cout, TS), lambda i, j: (i, 0, j)),
            pl.BlockSpec((Cout, 1), lambda i, j: (0, 0)),
            pl.BlockSpec((Cout, 1), lambda i, j: (0, 0)),
        ],
        out_specs=pl.BlockSpec((TB, Cout, TS), lambda i, j: (i, 0, j)),
        compiler_params=pltpu.CompilerParams(
            dimension_semantics=("parallel", "parallel"),
            vmem_limit_bytes=budget),
    )(y, scale, shift)

    # (N, Cout, H*W) is channel-major -> NCHW is a free reshape.
    return out.reshape(N, Cout, H, W)


# ----------------------------------------------------------------------------
# Pure-JAX reference with the PyTorch module's semantics (validation only).
# ----------------------------------------------------------------------------
def _reference(x, w, b, gamma, beta, eps=1e-5):
    y = jax.lax.conv_general_dilated(
        x, w, window_strides=(1, 1), padding=((1, 1), (1, 1)),
        dimension_numbers=("NCHW", "OIHW", "NCHW"),
        precision=jax.lax.Precision.HIGHEST)
    y = y + b[None, :, None, None]
    mean = jnp.mean(y, axis=(0, 2, 3), keepdims=True)
    var = jnp.mean(jnp.square(y - mean), axis=(0, 2, 3), keepdims=True)
    yhat = (y - mean) * jax.lax.rsqrt(var + eps)
    out = gamma[None, :, None, None] * yhat + beta[None, :, None, None]
    return jnp.maximum(out, 0.0)


if __name__ == "__main__":
    key = jax.random.PRNGKey(0)
    k_x, k_w, k_b, k_g, k_be = jax.random.split(key, 5)

    N, chi, cho, H, W = 2, 4, 8, 16, 16

    x = jax.random.normal(k_x, (N, chi, H, W), dtype=jnp.float32)
    # Synthetic parameters in PyTorch layouts: Conv2d weight (O, I, kh, kw).
    w = jax.random.normal(k_w, (cho, chi, 3, 3), dtype=jnp.float32) * 0.1
    b = jax.random.normal(k_b, (cho,), dtype=jnp.float32) * 0.1
    gamma = 1.0 + 0.1 * jax.random.normal(k_g, (cho,), dtype=jnp.float32)
    beta = 0.1 * jax.random.normal(k_be, (cho,), dtype=jnp.float32)

    out = jax.jit(deform_conv_forward)(x, w, b, gamma, beta)
    jax.block_until_ready(out)
    assert out.shape == (N, cho, H, W)

    ref = _reference(x, w, b, gamma, beta)
    max_err = float(jnp.max(jnp.abs(out - ref)))
    # bf16 MXU operands + bf16 y intermediate => ~1e-2-level agreement vs f32.
    assert max_err < 3e-2, f"mismatch vs reference: max abs err {max_err}"

    print("KERNEL_OK")
</pallas_src>

<mosaic_0001>
module attributes {stable_mosaic.version = 11 : i64} {
  func.func @bn_relu_kernel(%arg0: i32, %arg1: i32, %arg2: memref<2x8x256xbf16, #tpu.memory_space<vmem>>, %arg3: memref<8x1xf32, #tpu.memory_space<vmem>>, %arg4: memref<8x1xf32, #tpu.memory_space<vmem>>, %arg5: memref<2x8x256xf32, #tpu.memory_space<vmem>>) attributes {dimension_semantics = [#tpu.dimension_semantics<parallel>, #tpu.dimension_semantics<parallel>], iteration_bounds = array<i64: 1, 1>, scalar_prefetch = 0 : i64, scratch_operands = 0 : i64, tpu.core_type = #tpu.core_type<tc>, window_params = [{transform_indices = @transform_0, window_bounds = array<i64: 2, 8, 256>}, {pipeline_mode = #tpu.pipeline_mode<synchronous>, transform_indices = @transform_1, window_bounds = array<i64: 8, 1>}, {pipeline_mode = #tpu.pipeline_mode<synchronous>, transform_indices = @transform_2, window_bounds = array<i64: 8, 1>}, {transform_indices = @transform_3, window_bounds = array<i64: 2, 8, 256>}]} {
    %c0 = arith.constant 0 : index
    %c0_0 = arith.constant 0 : index
    %c0_1 = arith.constant 0 : index
    %0 = vector.load %arg2[%c0, %c0_0, %c0_1] : memref<2x8x256xbf16, #tpu.memory_space<vmem>>, vector<2x8x256xbf16>
    %1 = arith.extf %0 : vector<2x8x256xbf16> to vector<2x8x256xf32>
    %c0_2 = arith.constant 0 : index
    %c0_3 = arith.constant 0 : index
    %2 = vector.load %arg3[%c0_2, %c0_3] : memref<8x1xf32, #tpu.memory_space<vmem>>, vector<8x1xf32>
    %3 = vector.shape_cast %2 : vector<8x1xf32> to vector<1x8x1xf32>
    %4 = vector.broadcast %3 : vector<1x8x1xf32> to vector<2x8x256xf32>
    %5 = arith.mulf %1, %4 : vector<2x8x256xf32>
    %c0_4 = arith.constant 0 : index
    %c0_5 = arith.constant 0 : index
    %6 = vector.load %arg4[%c0_4, %c0_5] : memref<8x1xf32, #tpu.memory_space<vmem>>, vector<8x1xf32>
    %7 = vector.shape_cast %6 : vector<8x1xf32> to vector<1x8x1xf32>
    %8 = vector.broadcast %7 : vector<1x8x1xf32> to vector<2x8x256xf32>
    %9 = arith.addf %5, %8 : vector<2x8x256xf32>
    %cst = arith.constant 0.000000e+00 : f32
    %10 = vector.broadcast %cst : f32 to vector<2x8x256xf32>
    %11 = arith.maximumf %9, %10 : vector<2x8x256xf32>
    %c0_6 = arith.constant 0 : index
    %c0_7 = arith.constant 0 : index
    %c0_8 = arith.constant 0 : index
    %12 = vector.load %arg5[%c0_6, %c0_7, %c0_8] : memref<2x8x256xf32, #tpu.memory_space<vmem>>, vector<2x8x256xf32>
    tpu.vector_store %arg5[%c0_6, %c0_7, %c0_8], %11 {strides = array<i32>} : memref<2x8x256xf32, #tpu.memory_space<vmem>>, vector<2x8x256xf32>,
    return
  }
  func.func @transform_0(%arg0: i32, %arg1: i32) -> (i32, i32, i32) {
    %c0_i32 = arith.constant 0 : i32
    %c0_i32_0 = arith.constant 0 : i32
    return %arg0, %c0_i32, %arg1 : i32, i32, i32
  }
  func.func @transform_1(%arg0: i32, %arg1: i32) -> (i32, i32) {
    %c0_i32 = arith.constant 0 : i32
    %c0_i32_0 = arith.constant 0 : i32
    %c0_i32_1 = arith.constant 0 : i32
    return %c0_i32, %c0_i32_0 : i32, i32
  }
  func.func @transform_2(%arg0: i32, %arg1: i32) -> (i32, i32) {
    %c0_i32 = arith.constant 0 : i32
    %c0_i32_0 = arith.constant 0 : i32
    %c0_i32_1 = arith.constant 0 : i32
    return %c0_i32, %c0_i32_0 : i32, i32
  }
  func.func @transform_3(%arg0: i32, %arg1: i32) -> (i32, i32, i32) {
    %c0_i32 = arith.constant 0 : i32
    %c0_i32_0 = arith.constant 0 : i32
    return %arg0, %c0_i32, %arg1 : i32, i32, i32
  }
}

module attributes {stable_mosaic.version = 11 : i64} {
  func.func @conv_stats_kernel(%arg0: i32, %arg1: i32, %arg2: memref<1x1x4x326xf32, #tpu.memory_space<vmem>>, %arg3: memref<8x36xbf16, #tpu.memory_space<vmem>>, %arg4: memref<8x1xf32, #tpu.memory_space<vmem>>, %arg5: memref<1x288xf32, #tpu.memory_space<vmem>>, %arg6: memref<1x8x256xbf16, #tpu.memory_space<vmem>>, %arg7: memref<1x1x8x1xf32, #tpu.memory_space<vmem>>, %arg8: memref<1x1x8x1xf32, #tpu.memory_space<vmem>>, %arg9: memref<36x288xf32, #tpu.memory_space<vmem>>) attributes {dimension_semantics = [#tpu.dimension_semantics<parallel>, #tpu.dimension_semantics<parallel>], iteration_bounds = array<i64: 2, 1>, scalar_prefetch = 0 : i64, scratch_operands = 1 : i64, tpu.core_type = #tpu.core_type<tc>, window_params = [{transform_indices = @transform_0, window_bounds = array<i64: 1, 1, 4, 326>}, {pipeline_mode = #tpu.pipeline_mode<synchronous>, transform_indices = @transform_1, window_bounds = array<i64: 8, 36>}, {pipeline_mode = #tpu.pipeline_mode<synchronous>, transform_indices = @transform_2, window_bounds = array<i64: 8, 1>}, {pipeline_mode = #tpu.pipeline_mode<synchronous>, transform_indices = @transform_3, window_bounds = array<i64: 1, 288>}, {transform_indices = @transform_4, window_bounds = array<i64: 1, 8, 256>}, {transform_indices = @transform_5, window_bounds = array<i64: 1, 1, 8, 1>}, {transform_indices = @transform_6, window_bounds = array<i64: 1, 1, 8, 1>}]} {
    %c0 = arith.constant 0 : index
    %c0_0 = arith.constant 0 : index
    %c0_1 = arith.constant 0 : index
    %c0_2 = arith.constant 0 : index
    %0 = vector.load %arg2[%c0, %c0_0, %c0_1, %c0_2] : memref<1x1x4x326xf32, #tpu.memory_space<vmem>>, vector<1x1x4x288xf32>
    %1 = vector.shape_cast %0 : vector<1x1x4x288xf32> to vector<4x288xf32>
    %c0_3 = arith.constant 0 : index
    %c0_4 = arith.constant 0 : index
    %2 = vector.load %arg9[%c0_3, %c0_4] : memref<36x288xf32, #tpu.memory_space<vmem>>, vector<4x288xf32>
    tpu.vector_store %arg9[%c0_3, %c0_4], %1 {strides = array<i32>} : memref<36x288xf32, #tpu.memory_space<vmem>>, vector<4x288xf32>,
    %c0_5 = arith.constant 0 : index
    %c0_6 = arith.constant 0 : index
    %c0_7 = arith.constant 0 : index
    %c1 = arith.constant 1 : index
    %3 = vector.load %arg2[%c0_5, %c0_6, %c0_7, %c1] : memref<1x1x4x326xf32, #tpu.memory_space<vmem>>, vector<1x1x4x288xf32>
    %4 = vector.shape_cast %3 : vector<1x1x4x288xf32> to vector<4x288xf32>
    %c4 = arith.constant 4 : index
    %c0_8 = arith.constant 0 : index
    %5 = vector.load %arg9[%c4, %c0_8] : memref<36x288xf32, #tpu.memory_space<vmem>>, vector<4x288xf32>
    tpu.vector_store %arg9[%c4, %c0_8], %4 {strides = array<i32>} : memref<36x288xf32, #tpu.memory_space<vmem>>, vector<4x288xf32>,
    %c0_9 = arith.constant 0 : index
    %c0_10 = arith.constant 0 : index
    %c0_11 = arith.constant 0 : index
    %c2 = arith.constant 2 : index
    %6 = vector.load %arg2[%c0_9, %c0_10, %c0_11, %c2] : memref<1x1x4x326xf32, #tpu.memory_space<vmem>>, vector<1x1x4x288xf32>
    %7 = vector.shape_cast %6 : vector<1x1x4x288xf32> to vector<4x288xf32>
    %c8 = arith.constant 8 : index
    %c0_12 = arith.constant 0 : index
    %8 = vector.load %arg9[%c8, %c0_12] : memref<36x288xf32, #tpu.memory_space<vmem>>, vector<4x288xf32>
    tpu.vector_store %arg9[%c8, %c0_12], %7 {strides = array<i32>} : memref<36x288xf32, #tpu.memory_space<vmem>>, vector<4x288xf32>,
    %c0_13 = arith.constant 0 : index
    %c0_14 = arith.constant 0 : index
    %c0_15 = arith.constant 0 : index
    %c18 = arith.constant 18 : index
    %9 = vector.load %arg2[%c0_13, %c0_14, %c0_15, %c18] : memref<1x1x4x326xf32, #tpu.memory_space<vmem>>, vector<1x1x4x288xf32>
    %10 = vector.shape_cast %9 : vector<1x1x4x288xf32> to vector<4x288xf32>
    %c12 = arith.constant 12 : index
    %c0_16 = arith.constant 0 : index
    %11 = vector.load %arg9[%c12, %c0_16] : memref<36x288xf32, #tpu.memory_space<vmem>>, vector<4x288xf32>
    tpu.vector_store %arg9[%c12, %c0_16], %10 {strides = array<i32>} : memref<36x288xf32, #tpu.memory_space<vmem>>, vector<4x288xf32>,
    %c0_17 = arith.constant 0 : index
    %c0_18 = arith.constant 0 : index
    %c0_19 = arith.constant 0 : index
    %c19 = arith.constant 19 : index
    %12 = vector.load %arg2[%c0_17, %c0_18, %c0_19, %c19] : memref<1x1x4x326xf32, #tpu.memory_space<vmem>>, vector<1x1x4x288xf32>
    %13 = vector.shape_cast %12 : vector<1x1x4x288xf32> to vector<4x288xf32>
    %c16 = arith.constant 16 : index
    %c0_20 = arith.constant 0 : index
    %14 = vector.load %arg9[%c16, %c0_20] : memref<36x288xf32, #tpu.memory_space<vmem>>, vector<4x288xf32>
    tpu.vector_store %arg9[%c16, %c0_20], %13 {strides = array<i32>} : memref<36x288xf32, #tpu.memory_space<vmem>>, vector<4x288xf32>,
    %c0_21 = arith.constant 0 : index
    %c0_22 = arith.constant 0 : index
    %c0_23 = arith.constant 0 : index
    %c20 = arith.constant 20 : index
    %15 = vector.load %arg2[%c0_21, %c0_22, %c0_23, %c20] : memref<1x1x4x326xf32, #tpu.memory_space<vmem>>, vector<1x1x4x288xf32>
    %16 = vector.shape_cast %15 : vector<1x1x4x288xf32> to vector<4x288xf32>
    %c20_24 = arith.constant 20 : index
    %c0_25 = arith.constant 0 : index
    %17 = vector.load %arg9[%c20_24, %c0_25] : memref<36x288xf32, #tpu.memory_space<vmem>>, vector<4x288xf32>
    tpu.vector_store %arg9[%c20_24, %c0_25], %16 {strides = array<i32>} : memref<36x288xf32, #tpu.memory_space<vmem>>, vector<4x288xf32>,
    %c0_26 = arith.constant 0 : index
    %c0_27 = arith.constant 0 : index
    %c0_28 = arith.constant 0 : index
    %c36 = arith.constant 36 : index
    %18 = vector.load %arg2[%c0_26, %c0_27, %c0_28, %c36] : memref<1x1x4x326xf32, #tpu.memory_space<vmem>>, vector<1x1x4x288xf32>
    %19 = vector.shape_cast %18 : vector<1x1x4x288xf32> to vector<4x288xf32>
    %c24 = arith.constant 24 : index
    %c0_29 = arith.constant 0 : index
    %20 = vector.load %arg9[%c24, %c0_29] : memref<36x288xf32, #tpu.memory_space<vmem>>, vector<4x288xf32>
    tpu.vector_store %arg9[%c24, %c0_29], %19 {strides = array<i32>} : memref<36x288xf32, #tpu.memory_space<vmem>>, vector<4x288xf32>,
    %c0_30 = arith.constant 0 : index
    %c0_31 = arith.constant 0 : index
    %c0_32 = arith.constant 0 : index
    %c37 = arith.constant 37 : index
    %21 = vector.load %arg2[%c0_30, %c0_31, %c0_32, %c37] : memref<1x1x4x326xf32, #tpu.memory_space<vmem>>, vector<1x1x4x288xf32>
    %22 = vector.shape_cast %21 : vector<1x1x4x288xf32> to vector<4x288xf32>
    %c28 = arith.constant 28 : index
    %c0_33 = arith.constant 0 : index
    %23 = vector.load %arg9[%c28, %c0_33] : memref<36x288xf32, #tpu.memory_space<vmem>>, vector<4x288xf32>
    tpu.vector_store %arg9[%c28, %c0_33], %22 {strides = array<i32>} : memref<36x288xf32, #tpu.memory_space<vmem>>, vector<4x288xf32>,
    %c0_34 = arith.constant 0 : index
    %c0_35 = arith.constant 0 : index
    %c0_36 = arith.constant 0 : index
    %c38 = arith.constant 38 : index
    %24 = vector.load %arg2[%c0_34, %c0_35, %c0_36, %c38] : memref<1x1x4x326xf32, #tpu.memory_space<vmem>>, vector<1x1x4x288xf32>
    %25 = vector.shape_cast %24 : vector<1x1x4x288xf32> to vector<4x288xf32>
    %c32 = arith.constant 32 : index
    %c0_37 = arith.constant 0 : index
    %26 = vector.load %arg9[%c32, %c0_37] : memref<36x288xf32, #tpu.memory_space<vmem>>, vector<4x288xf32>
    tpu.vector_store %arg9[%c32, %c0_37], %25 {strides = array<i32>} : memref<36x288xf32, #tpu.memory_space<vmem>>, vector<4x288xf32>,
    %c0_38 = arith.constant 0 : index
    %c0_39 = arith.constant 0 : index
    %27 = vector.load %arg9[%c0_38, %c0_39] : memref<36x288xf32, #tpu.memory_space<vmem>>, vector<36x288xf32>
    %28 = arith.truncf %27 : vector<36x288xf32> to vector<36x288xbf16>
    %c0_40 = arith.constant 0 : index
    %c0_41 = arith.constant 0 : index
    %29 = vector.load %arg3[%c0_40, %c0_41] : memref<8x36xbf16, #tpu.memory_space<vmem>>, vector<8x36xbf16>
    %cst = arith.constant dense<0.000000e+00> : vector<8x288xf32>
    %30 = tpu.matmul %29, %28, %cst {dimension_numbers = #tpu.dot_dimension_numbers<[1], [0], [0], [1], [0, 0, 1, 1], [], []>} : vector<8x36xbf16>, vector<36x288xbf16>, vector<8x288xf32> -> vector<8x288xf32>
    %c0_42 = arith.constant 0 : index
    %c0_43 = arith.constant 0 : index
    %31 = vector.load %arg4[%c0_42, %c0_43] : memref<8x1xf32, #tpu.memory_space<vmem>>, vector<8x1xf32>
    %32 = vector.broadcast %31 : vector<8x1xf32> to vector<8x288xf32>
    %33 = arith.addf %30, %32 : vector<8x288xf32>
    %34 = vector.extract_strided_slice %33 {offsets = [0, 1], sizes = [8, 16], strides = [1, 1]} : vector<8x288xf32> to vector<8x16xf32>
    %35 = arith.truncf %34 : vector<8x16xf32> to vector<8x16xbf16>
    %c0_44 = arith.constant 0 : index
    %c0_45 = arith.constant 0 : index
    %c0_46 = arith.constant 0 : index
    %36 = vector.load %arg6[%c0_44, %c0_45, %c0_46] : memref<1x8x256xbf16, #tpu.memory_space<vmem>>, vector<1x8x16xbf16>
    %37 = vector.shape_cast %36 : vector<1x8x16xbf16> to vector<8x16xbf16>
    %38 = vector.shape_cast %35 : vector<8x16xbf16> to vector<1x8x16xbf16>
    tpu.vector_store %arg6[%c0_44, %c0_45, %c0_46], %38 {strides = array<i32>} : memref<1x8x256xbf16, #tpu.memory_space<vmem>>, vector<1x8x16xbf16>,
    %39 = vector.extract_strided_slice %33 {offsets = [0, 19], sizes = [8, 16], strides = [1, 1]} : vector<8x288xf32> to vector<8x16xf32>
    %40 = arith.truncf %39 : vector<8x16xf32> to vector<8x16xbf16>
    %c0_47 = arith.constant 0 : index
    %c0_48 = arith.constant 0 : index
    %c16_49 = arith.constant 16 : index
    %41 = vector.load %arg6[%c0_47, %c0_48, %c16_49] : memref<1x8x256xbf16, #tpu.memory_space<vmem>>, vector<1x8x16xbf16>
    %42 = vector.shape_cast %41 : vector<1x8x16xbf16> to vector<8x16xbf16>
    %43 = vector.shape_cast %40 : vector<8x16xbf16> to vector<1x8x16xbf16>
    tpu.vector_store %arg6[%c0_47, %c0_48, %c16_49], %43 {strides = array<i32>} : memref<1x8x256xbf16, #tpu.memory_space<vmem>>, vector<1x8x16xbf16>,
    %44 = vector.extract_strided_slice %33 {offsets = [0, 37], sizes = [8, 16], strides = [1, 1]} : vector<8x288xf32> to vector<8x16xf32>
    %45 = arith.truncf %44 : vector<8x16xf32> to vector<8x16xbf16>
    %c0_50 = arith.constant 0 : index
    %c0_51 = arith.constant 0 : index
    %c32_52 = arith.constant 32 : index
    %46 = vector.load %arg6[%c0_50, %c0_51, %c32_52] : memref<1x8x256xbf16, #tpu.memory_space<vmem>>, vector<1x8x16xbf16>
    %47 = vector.shape_cast %46 : vector<1x8x16xbf16> to vector<8x16xbf16>
    %48 = vector.shape_cast %45 : vector<8x16xbf16> to vector<1x8x16xbf16>
    tpu.vector_store %arg6[%c0_50, %c0_51, %c32_52], %48 {strides = array<i32>} : memref<1x8x256xbf16, #tpu.memory_space<vmem>>, vector<1x8x16xbf16>,
    %49 = vector.extract_strided_slice %33 {offsets = [0, 55], sizes = [8, 16], strides = [1, 1]} : vector<8x288xf32> to vector<8x16xf32>
    %50 = arith.truncf %49 : vector<8x16xf32> to vector<8x16xbf16>
    %c0_53 = arith.constant 0 : index
    %c0_54 = arith.constant 0 : index
    %c48 = arith.constant 48 : index
    %51 = vector.load %arg6[%c0_53, %c0_54, %c48] : memref<1x8x256xbf16, #tpu.memory_space<vmem>>, vector<1x8x16xbf16>
    %52 = vector.shape_cast %51 : vector<1x8x16xbf16> to vector<8x16xbf16>
    %53 = vector.shape_cast %50 : vector<8x16xbf16> to vector<1x8x16xbf16>
    tpu.vector_store %arg6[%c0_53, %c0_54, %c48], %53 {strides = array<i32>} : memref<1x8x256xbf16, #tpu.memory_space<vmem>>, vector<1x8x16xbf16>,
    %54 = vector.extract_strided_slice %33 {offsets = [0, 73], sizes = [8, 16], strides = [1, 1]} : vector<8x288xf32> to vector<8x16xf32>
    %55 = arith.truncf %54 : vector<8x16xf32> to vector<8x16xbf16>
    %c0_55 = arith.constant 0 : index
    %c0_56 = arith.constant 0 : index
    %c64 = arith.constant 64 : index
    %56 = vector.load %arg6[%c0_55, %c0_56, %c64] : memref<1x8x256xbf16, #tpu.memory_space<vmem>>, vector<1x8x16xbf16>
    %57 = vector.shape_cast %56 : vector<1x8x16xbf16> to vector<8x16xbf16>
    %58 = vector.shape_cast %55 : vector<8x16xbf16> to vector<1x8x16xbf16>
    tpu.vector_store %arg6[%c0_55, %c0_56, %c64], %58 {strides = array<i32>} : memref<1x8x256xbf16, #tpu.memory_space<vmem>>, vector<1x8x16xbf16>,
    %59 = vector.extract_strided_slice %33 {offsets = [0, 91], sizes = [8, 16], strides = [1, 1]} : vector<8x288xf32> to vector<8x16xf32>
    %60 = arith.truncf %59 : vector<8x16xf32> to vector<8x16xbf16>
    %c0_57 = arith.constant 0 : index
    %c0_58 = arith.constant 0 : index
    %c80 = arith.constant 80 : index
    %61 = vector.load %arg6[%c0_57, %c0_58, %c80] : memref<1x8x256xbf16, #tpu.memory_space<vmem>>, vector<1x8x16xbf16>
    %62 = vector.shape_cast %61 : vector<1x8x16xbf16> to vector<8x16xbf16>
    %63 = vector.shape_cast %60 : vector<8x16xbf16> to vector<1x8x16xbf16>
    tpu.vector_store %arg6[%c0_57, %c0_58, %c80], %63 {strides = array<i32>} : memref<1x8x256xbf16, #tpu.memory_space<vmem>>, vector<1x8x16xbf16>,
    %64 = vector.extract_strided_slice %33 {offsets = [0, 109], sizes = [8, 16], strides = [1, 1]} : vector<8x288xf32> to vector<8x16xf32>
    %65 = arith.truncf %64 : vector<8x16xf32> to vector<8x16xbf16>
    %c0_59 = arith.constant 0 : index
    %c0_60 = arith.constant 0 : index
    %c96 = arith.constant 96 : index
    %66 = vector.load %arg6[%c0_59, %c0_60, %c96] : memref<1x8x256xbf16, #tpu.memory_space<vmem>>, vector<1x8x16xbf16>
    %67 = vector.shape_cast %66 : vector<1x8x16xbf16> to vector<8x16xbf16>
    %68 = vector.shape_cast %65 : vector<8x16xbf16> to vector<1x8x16xbf16>
    tpu.vector_store %arg6[%c0_59, %c0_60, %c96], %68 {strides = array<i32>} : memref<1x8x256xbf16, #tpu.memory_space<vmem>>, vector<1x8x16xbf16>,
    %69 = vector.extract_strided_slice %33 {offsets = [0, 127], sizes = [8, 16], strides = [1, 1]} : vector<8x288xf32> to vector<8x16xf32>
    %70 = arith.truncf %69 : vector<8x16xf32> to vector<8x16xbf16>
    %c0_61 = arith.constant 0 : index
    %c0_62 = arith.constant 0 : index
    %c112 = arith.constant 112 : index
    %71 = vector.load %arg6[%c0_61, %c0_62, %c112] : memref<1x8x256xbf16, #tpu.memory_space<vmem>>, vector<1x8x16xbf16>
    %72 = vector.shape_cast %71 : vector<1x8x16xbf16> to vector<8x16xbf16>
    %73 = vector.shape_cast %70 : vector<8x16xbf16> to vector<1x8x16xbf16>
    tpu.vector_store %arg6[%c0_61, %c0_62, %c112], %73 {strides = array<i32>} : memref<1x8x256xbf16, #tpu.memory_space<vmem>>, vector<1x8x16xbf16>,
    %74 = vector.extract_strided_slice %33 {offsets = [0, 145], sizes = [8, 16], strides = [1, 1]} : vector<8x288xf32> to vector<8x16xf32>
    %75 = arith.truncf %74 : vector<8x16xf32> to vector<8x16xbf16>
    %c0_63 = arith.constant 0 : index
    %c0_64 = arith.constant 0 : index
    %c128 = arith.constant 128 : index
    %76 = vector.load %arg6[%c0_63, %c0_64, %c128] : memref<1x8x256xbf16, #tpu.memory_space<vmem>>, vector<1x8x16xbf16>
    %77 = vector.shape_cast %76 : vector<1x8x16xbf16> to vector<8x16xbf16>
    %78 = vector.shape_cast %75 : vector<8x16xbf16> to vector<1x8x16xbf16>
    tpu.vector_store %arg6[%c0_63, %c0_64, %c128], %78 {strides = array<i32>} : memref<1x8x256xbf16, #tpu.memory_space<vmem>>, vector<1x8x16xbf16>,
    %79 = vector.extract_strided_slice %33 {offsets = [0, 163], sizes = [8, 16], strides = [1, 1]} : vector<8x288xf32> to vector<8x16xf32>
    %80 = arith.truncf %79 : vector<8x16xf32> to vector<8x16xbf16>
    %c0_65 = arith.constant 0 : index
    %c0_66 = arith.constant 0 : index
    %c144 = arith.constant 144 : index
    %81 = vector.load %arg6[%c0_65, %c0_66, %c144] : memref<1x8x256xbf16, #tpu.memory_space<vmem>>, vector<1x8x16xbf16>
    %82 = vector.shape_cast %81 : vector<1x8x16xbf16> to vector<8x16xbf16>
    %83 = vector.shape_cast %80 : vector<8x16xbf16> to vector<1x8x16xbf16>
    tpu.vector_store %arg6[%c0_65, %c0_66, %c144], %83 {strides = array<i32>} : memref<1x8x256xbf16, #tpu.memory_space<vmem>>, vector<1x8x16xbf16>,
    %84 = vector.extract_strided_slice %33 {offsets = [0, 181], sizes = [8, 16], strides = [1, 1]} : vector<8x288xf32> to vector<8x16xf32>
    %85 = arith.truncf %84 : vector<8x16xf32> to vector<8x16xbf16>
    %c0_67 = arith.constant 0 : index
    %c0_68 = arith.constant 0 : index
    %c160 = arith.constant 160 : index
    %86 = vector.load %arg6[%c0_67, %c0_68, %c160] : memref<1x8x256xbf16, #tpu.memory_space<vmem>>, vector<1x8x16xbf16>
    %87 = vector.shape_cast %86 : vector<1x8x16xbf16> to vector<8x16xbf16>
    %88 = vector.shape_cast %85 : vector<8x16xbf16> to vector<1x8x16xbf16>
    tpu.vector_store %arg6[%c0_67, %c0_68, %c160], %88 {strides = array<i32>} : memref<1x8x256xbf16, #tpu.memory_space<vmem>>, vector<1x8x16xbf16>,
    %89 = vector.extract_strided_slice %33 {offsets = [0, 199], sizes = [8, 16], strides = [1, 1]} : vector<8x288xf32> to vector<8x16xf32>
    %90 = arith.truncf %89 : vector<8x16xf32> to vector<8x16xbf16>
    %c0_69 = arith.constant 0 : index
    %c0_70 = arith.constant 0 : index
    %c176 = arith.constant 176 : index
    %91 = vector.load %arg6[%c0_69, %c0_70, %c176] : memref<1x8x256xbf16, #tpu.memory_space<vmem>>, vector<1x8x16xbf16>
    %92 = vector.shape_cast %91 : vector<1x8x16xbf16> to vector<8x16xbf16>
    %93 = vector.shape_cast %90 : vector<8x16xbf16> to vector<1x8x16xbf16>
    tpu.vector_store %arg6[%c0_69, %c0_70, %c176], %93 {strides = array<i32>} : memref<1x8x256xbf16, #tpu.memory_space<vmem>>, vector<1x8x16xbf16>,
    %94 = vector.extract_strided_slice %33 {offsets = [0, 217], sizes = [8, 16], strides = [1, 1]} : vector<8x288xf32> to vector<8x16xf32>
    %95 = arith.truncf %94 : vector<8x16xf32> to vector<8x16xbf16>
    %c0_71 = arith.constant 0 : index
    %c0_72 = arith.constant 0 : index
    %c192 = arith.constant 192 : index
    %96 = vector.load %arg6[%c0_71, %c0_72, %c192] : memref<1x8x256xbf16, #tpu.memory_space<vmem>>, vector<1x8x16xbf16>
    %97 = vector.shape_cast %96 : vector<1x8x16xbf16> to vector<8x16xbf16>
    %98 = vector.shape_cast %95 : vector<8x16xbf16> to vector<1x8x16xbf16>
    tpu.vector_store %arg6[%c0_71, %c0_72, %c192], %98 {strides = array<i32>} : memref<1x8x256xbf16, #tpu.memory_space<vmem>>, vector<1x8x16xbf16>,
    %99 = vector.extract_strided_slice %33 {offsets = [0, 235], sizes = [8, 16], strides = [1, 1]} : vector<8x288xf32> to vector<8x16xf32>
    %100 = arith.truncf %99 : vector<8x16xf32> to vector<8x16xbf16>
    %c0_73 = arith.constant 0 : index
    %c0_74 = arith.constant 0 : index
    %c208 = arith.constant 208 : index
    %101 = vector.load %arg6[%c0_73, %c0_74, %c208] : memref<1x8x256xbf16, #tpu.memory_space<vmem>>, vector<1x8x16xbf16>
    %102 = vector.shape_cast %101 : vector<1x8x16xbf16> to vector<8x16xbf16>
    %103 = vector.shape_cast %100 : vector<8x16xbf16> to vector<1x8x16xbf16>
    tpu.vector_store %arg6[%c0_73, %c0_74, %c208], %103 {strides = array<i32>} : memref<1x8x256xbf16, #tpu.memory_space<vmem>>, vector<1x8x16xbf16>,
    %104 = vector.extract_strided_slice %33 {offsets = [0, 253], sizes = [8, 16], strides = [1, 1]} : vector<8x288xf32> to vector<8x16xf32>
    %105 = arith.truncf %104 : vector<8x16xf32> to vector<8x16xbf16>
    %c0_75 = arith.constant 0 : index
    %c0_76 = arith.constant 0 : index
    %c224 = arith.constant 224 : index
    %106 = vector.load %arg6[%c0_75, %c0_76, %c224] : memref<1x8x256xbf16, #tpu.memory_space<vmem>>, vector<1x8x16xbf16>
    %107 = vector.shape_cast %106 : vector<1x8x16xbf16> to vector<8x16xbf16>
    %108 = vector.shape_cast %105 : vector<8x16xbf16> to vector<1x8x16xbf16>
    tpu.vector_store %arg6[%c0_75, %c0_76, %c224], %108 {strides = array<i32>} : memref<1x8x256xbf16, #tpu.memory_space<vmem>>, vector<1x8x16xbf16>,
    %109 = vector.extract_strided_slice %33 {offsets = [0, 271], sizes = [8, 16], strides = [1, 1]} : vector<8x288xf32> to vector<8x16xf32>
    %110 = arith.truncf %109 : vector<8x16xf32> to vector<8x16xbf16>
    %c0_77 = arith.constant 0 : index
    %c0_78 = arith.constant 0 : index
    %c240 = arith.constant 240 : index
    %111 = vector.load %arg6[%c0_77, %c0_78, %c240] : memref<1x8x256xbf16, #tpu.memory_space<vmem>>, vector<1x8x16xbf16>
    %112 = vector.shape_cast %111 : vector<1x8x16xbf16> to vector<8x16xbf16>
    %113 = vector.shape_cast %110 : vector<8x16xbf16> to vector<1x8x16xbf16>
    tpu.vector_store %arg6[%c0_77, %c0_78, %c240], %113 {strides = array<i32>} : memref<1x8x256xbf16, #tpu.memory_space<vmem>>, vector<1x8x16xbf16>,
    %c0_79 = arith.constant 0 : index
    %c0_80 = arith.constant 0 : index
    %114 = vector.load %arg5[%c0_79, %c0_80] : memref<1x288xf32, #tpu.memory_space<vmem>>, vector<1x288xf32>
    %115 = vector.broadcast %114 : vector<1x288xf32> to vector<8x288xf32>
    %116 = arith.mulf %33, %115 : vector<8x288xf32>
    %cst_81 = arith.constant dense<0.000000e+00> : vector<8xf32>
    %117 = vector.multi_reduction <add>, %116, %cst_81 [1] : vector<8x288xf32> to vector<8xf32>
    %118 = vector.shape_cast %117 : vector<8xf32> to vector<8x1xf32>
    %c0_82 = arith.constant 0 : index
    %c0_83 = arith.constant 0 : index
    %c0_84 = arith.constant 0 : index
    %c0_85 = arith.constant 0 : index
    %119 = vector.load %arg7[%c0_82, %c0_83, %c0_84, %c0_85] : memref<1x1x8x1xf32, #tpu.memory_space<vmem>>, vector<1x1x8x1xf32>
    %120 = vector.shape_cast %119 : vector<1x1x8x1xf32> to vector<8x1xf32>
    %121 = vector.shape_cast %118 : vector<8x1xf32> to vector<1x1x8x1xf32>
    tpu.vector_store %arg7[%c0_82, %c0_83, %c0_84, %c0_85], %121 {strides = array<i32>} : memref<1x1x8x1xf32, #tpu.memory_space<vmem>>, vector<1x1x8x1xf32>,
    %122 = arith.mulf %116, %33 : vector<8x288xf32>
    %cst_86 = arith.constant dense<0.000000e+00> : vector<8xf32>
    %123 = vector.multi_reduction <add>, %122, %cst_86 [1] : vector<8x288xf32> to vector<8xf32>
    %124 = vector.shape_cast %123 : vector<8xf32> to vector<8x1xf32>
    %c0_87 = arith.constant 0 : index
    %c0_88 = arith.constant 0 : index
    %c0_89 = arith.constant 0 : index
    %c0_90 = arith.constant 0 : index
    %125 = vector.load %arg8[%c0_87, %c0_88, %c0_89, %c0_90] : memref<1x1x8x1xf32, #tpu.memory_space<vmem>>, vector<1x1x8x1xf32>
    %126 = vector.shape_cast %125 : vector<1x1x8x1xf32> to vector<8x1xf32>
    %127 = vector.shape_cast %124 : vector<8x1xf32> to vector<1x1x8x1xf32>
    tpu.vector_store %arg8[%c0_87, %c0_88, %c0_89, %c0_90], %127 {strides = array<i32>} : memref<1x1x8x1xf32, #tpu.memory_space<vmem>>, vector<1x1x8x1xf32>,
    return
  }
  func.func @transform_0(%arg0: i32, %arg1: i32) -> (i32, i32, i32, i32) {
    %c0_i32 = arith.constant 0 : i32
    %c0_i32_0 = arith.constant 0 : i32
    %c0_i32_1 = arith.constant 0 : i32
    return %arg0, %arg1, %c0_i32, %c0_i32_0 : i32, i32, i32, i32
  }
  func.func @transform_1(%arg0: i32, %arg1: i32) -> (i32, i32) {
    %c0_i32 = arith.constant 0 : i32
    %c0_i32_0 = arith.constant 0 : i32
    %c0_i32_1 = arith.constant 0 : i32
    return %c0_i32, %c0_i32_0 : i32, i32
  }
  func.func @transform_2(%arg0: i32, %arg1: i32) -> (i32, i32) {
    %c0_i32 = arith.constant 0 : i32
    %c0_i32_0 = arith.constant 0 : i32
    %c0_i32_1 = arith.constant 0 : i32
    return %c0_i32, %c0_i32_0 : i32, i32
  }
  func.func @transform_3(%arg0: i32, %arg1: i32) -> (i32, i32) {
    %c0_i32 = arith.constant 0 : i32
    %c0_i32_0 = arith.constant 0 : i32
    %c0_i32_1 = arith.constant 0 : i32
    return %c0_i32, %c0_i32_0 : i32, i32
  }
  func.func @transform_4(%arg0: i32, %arg1: i32) -> (i32, i32, i32) {
    %c0_i32 = arith.constant 0 : i32
    %c0_i32_0 = arith.constant 0 : i32
    return %arg0, %c0_i32, %arg1 : i32, i32, i32
  }
  func.func @transform_5(%arg0: i32, %arg1: i32) -> (i32, i32, i32, i32) {
    %c0_i32 = arith.constant 0 : i32
    %c0_i32_0 = arith.constant 0 : i32
    %c0_i32_1 = arith.constant 0 : i32
    return %arg0, %arg1, %c0_i32, %c0_i32_0 : i32, i32, i32, i32
  }
  func.func @transform_6(%arg0: i32, %arg1: i32) -> (i32, i32, i32, i32) {
    %c0_i32 = arith.constant 0 : i32
    %c0_i32_0 = arith.constant 0 : i32
    %c0_i32_1 = arith.constant 0 : i32
    return %arg0, %arg1, %c0_i32, %c0_i32_0 : i32, i32, i32, i32
  }
}

</mosaic_0001>

<llo_original>
// kernel: deform_conv_forward.3
$region0: #{deform_conv_forward.3}
  #allocation0 [shape = 'u32[]', space=smem, size = 0x4, offset = 0x4, fixed_abs, tag = 'smem constant byte address 0x4 - core index']
  #allocation1 [shape = 'u32[144,128]{1,0:T(1,128)}', space=vmem, size = 0x12000, scoped, tag = 'internal scratch']
  %s0 = inlined_call_operand.vmem [shape: bf16[2,8,256], index: 0, kind: input, shape index: {}]
  %s1 = inlined_call_operand.vmem [shape: f32[8,1], index: 1, kind: input, shape index: {}]
  %s2 = inlined_call_operand.vmem [shape: f32[8,1], index: 2, kind: input, shape index: {}]
  %s3 = inlined_call_operand.vmem [shape: f32[2,8,256], index: 3, kind: output, shape index: {}]
  %s4 = sld [smem:[#allocation0]]
  $region22: #{deform_conv_forward.3} parent=0
    _
  %s6 = ssub.s32 1, %s4
  %s7 = scalar_select 0, %s6, %s4
  // Predicated region
  $region2: #{deform_conv_forward.3} parent=0 // pred_check
    _
  $region3: #{deform_conv_forward.3} parent=0 // pred_check_branch
    %9 = sbr.rel (0) target = $region5
  $region4: #{deform_conv_forward.3} parent=0 // pred_region
    _
  $region5: #{deform_conv_forward.3} parent=0 // pred_fallthru
    _
  // Predicated region
  $region6: #{deform_conv_forward.3} parent=0 // pred_check
    _
  $region7: #{deform_conv_forward.3} parent=0 // pred_check_branch
    %11 = sbr.rel (0) target = $region9
  $region8: #{deform_conv_forward.3} parent=0 // pred_region
    _
  $region9: #{deform_conv_forward.3} parent=0 // pred_fallthru
    _
  // Predicated region
  $region10: #{deform_conv_forward.3} parent=0 // pred_check
    _
  $region11: #{deform_conv_forward.3} parent=0 // pred_check_branch
    %13 = sbr.rel (0) target = $region13
  $region12: #{deform_conv_forward.3} parent=0 // pred_region
    _
  $region13: #{deform_conv_forward.3} parent=0 // pred_fallthru
    _
  %v14 = vld [vmem:[%s0] sm:$0xff]
  %v15 = vld [vmem:[%s0 + $0x8] sm:$0xff]
  %v16 = vunpack.c.l.bf16 %v14
  %v17 = vunpack.c.h.bf16 %v14
  %v18 = vunpack.c.l.bf16 %v15
  %v19 = vunpack.c.h.bf16 %v15
  %v20 = vld [vmem:[%s1] sm:$0xff]
  %22 = vset.pattern.permute.xlu0 0
  %23 = vperm.xlu0 %22, %v20
  %v24 = vpop.permute.xlu0 %23
  %v26 = vmul.f32 %v16, %v24
  %v27 = vmul.f32 %v17, %v24
  %v28 = vmul.f32 %v18, %v24
  %v29 = vmul.f32 %v19, %v24
  %v30 = vld [vmem:[%s2] sm:$0xff]
  %32 = vset.pattern.permute.xlu0 0
  %33 = vperm.xlu0 %32, %v30
  %v34 = vpop.permute.xlu0 %33
  %v36 = vadd.f32 %v26, %v34
  %v37 = vadd.f32 %v27, %v34
  %v38 = vadd.f32 %v28, %v34
  %v39 = vadd.f32 %v29, %v34
  %v40 = vmax.f32 %v36, 0.0
  %v41 = vmax.f32 %v37, 0.0
  %v42 = vmax.f32 %v38, 0.0
  %v43 = vmax.f32 %v39, 0.0
  %44 = vst [vmem:[%s3] sm:$0xff] %v40
  %45 = vst [vmem:[%s3 + $0x8] sm:$0xff] %v41
  %46 = vst [vmem:[%s3 + $0x10] sm:$0xff] %v42
  %47 = vst [vmem:[%s3 + $0x18] sm:$0xff] %v43
  // Predicated region
  $region14: #{deform_conv_forward.3} parent=0 // pred_check
    _
  $region15: #{deform_conv_forward.3} parent=0 // pred_check_branch
    %49 = sbr.rel (0) target = $region17
  $region16: #{deform_conv_forward.3} parent=0 // pred_region
    _
  $region17: #{deform_conv_forward.3} parent=0 // pred_fallthru
    _
  // Predicated region
  $region18: #{deform_conv_forward.3} parent=0 // pred_check
    _
  $region19: #{deform_conv_forward.3} parent=0 // pred_check_branch
    %51 = sbr.rel (0) target = $region21
  $region20: #{deform_conv_forward.3} parent=0 // pred_region
    _
  $region21: #{deform_conv_forward.3} parent=0 // pred_fallthru
    _

// kernel: deform_conv_forward.2
$region0: #{deform_conv_forward.2}
  #allocation0 [shape = 'u32[]', space=smem, size = 0x4, offset = 0x4, fixed_abs, tag = 'smem constant byte address 0x4 - core index']
  #allocation1 [shape = 'u32[144,128]{1,0:T(1,128)}', space=vmem, size = 0x12000, scoped, tag = 'internal scratch']
  #allocation2 [shape = 'f32[36,288]{1,0:T(8,128)}', space=vmem, size = 0xf000, scoped, tag = 'scratch operand']
  %s0 = inlined_call_operand.vmem [shape: f32[2,1,4,326], index: 0, kind: input, shape index: {}]
  %s1 = inlined_call_operand.vmem [shape: bf16[8,36], index: 1, kind: input, shape index: {}]
  %s2 = inlined_call_operand.vmem [shape: f32[8,1], index: 2, kind: input, shape index: {}]
  %s3 = inlined_call_operand.vmem [shape: f32[1,288], index: 3, kind: input, shape index: {}]
  %s4 = inlined_call_operand.vmem [shape: bf16[2,8,256], index: 4, kind: output, shape index: {0}]
  %s5 = inlined_call_operand.vmem [shape: f32[2,1,8,1], index: 5, kind: output, shape index: {1}]
  %s6 = inlined_call_operand.vmem [shape: f32[2,1,8,1], index: 6, kind: output, shape index: {2}]
  %7 = xla_tuple %s4, %s5, %s6
  %s8 = sld [smem:[#allocation0]]
  $region65: #{deform_conv_forward.2} parent=0
    _
  %s10 = ssub.s32 1, %s8
  %s11 = scalar_select 0, %s10, %s8
  loop: start=0, step=1, limit=4
  $region2: #{deform_conv_forward.2} parent=0 // loop_pre_header
    _
  $region3: #{deform_conv_forward.2} parent=0 // loop_header
    %s13 = sphi 0, %s17
    %p14 = scmp.ge.s32.totalorder %s13, 4
    %s20 = sphi 0, %s32
    %s21 = sphi 0, %s28
    %s22 = sphi 0, %s20
    %s23 = sphi 0, %s21
    %s24 = sphi 0, %s22
    %s25 = sphi 0, %s23
    %s37 = sphi 0, %s39
    %s40 = sphi 0, %s37
    %s41 = sphi 0, %s40
    %s57 = sphi 0, %s41
    %s61 = sphi 0, %s61
    %s63 = sphi 0, %s61
    %s64 = sphi 0, %s63
    %s78 = sphi 0, %s64
    %s82 = sphi 0, %s82
    %s84 = sphi 0, %s82
    %s85 = sphi 0, %s84
    %s99 = sphi 0, %s85
    %s103 = sphi 0, %s103
    %s105 = sphi 0, %s103
    %s106 = sphi 0, %s105
    %s120 = sphi 0, %s106
    %s128 = sphi 0, %s130
    %s131 = sphi 0, %s128
    %s132 = sphi 0, %s131
    %s148 = sphi 0, %s132
    %s156 = sphi 0, %s158
    %s159 = sphi 0, %s156
    %s160 = sphi 0, %s159
    %s176 = sphi 0, %s160
    %s184 = sphi 0, %s186
    %s187 = sphi 0, %s184
    %s188 = sphi 0, %s187
    %s204 = sphi 0, %s188
  $region4: #{deform_conv_forward.2} parent=0 // loop_header_branch
    %16 = sbr.rel (%p14) target = $region8
  $region5: #{deform_conv_forward.2} parent=0 // loop_body
    %s18 = ssub.s32 %s13, 1
    %s19 = ssub.s32 %s13, 2
    %s26 = sadd.s32 1, %s21
    %p27 = scmp.ge.s32.totalorder %s26, 1
    %s28 = scalar_select %p27, 0, %s26
    %s29 = sadd.s32 1, %s20
    %s30 = scalar_select %p27, %s29, %s20
    %p31 = scmp.ge.s32.totalorder %s30, 2
    %s32 = scalar_select %p31, 0, %s30
    %s33 = ssub.s32 %s20, %s32
    %s34 = ssub.s32 %s21, %s28
    %s35 = sor.u32 %s33, %s34
    %p36 = scmp.eq.s32.totalorder %s35, 0
    %s38 = sadd.s32 %s37, 1
    %s39 = scalar_select %p36, %s37, %s38
    %p42 = pneg %p36
    %p43 = scmp.eq.s32.totalorder %s13, 1
    %p44 = por %p42, %p43
    %p45 = scmp.ne.s32.totalorder %s37, %s40
    %p46 = scmp.eq.s32.totalorder %s13, 0
    %p47 = por %p45, %p46
    %p48 = scmp.ne.s32.totalorder %s37, %s40
    %p49 = scmp.eq.s32.totalorder %s18, 1
    %p50 = por %p48, %p49
    %p51 = scmp.ne.s32.totalorder %s40, %s41
    %p52 = scmp.eq.s32.totalorder %s18, 0
    %p53 = por %p51, %p52
    %p54 = scmp.ne.s32.totalorder %s40, %s41
    %p55 = scmp.eq.s32.totalorder %s19, 1
    %p56 = por %p54, %p55
    %p58 = scmp.ne.s32.totalorder %s41, %s57
    %p59 = scmp.eq.s32.totalorder %s19, 0
    %p60 = por %p58, %p59
    %s62 = sadd.s32 %s61, 1
    %p65 = scmp.eq.s32.totalorder %s13, 1
    %p66 = scmp.ne.s32.totalorder %s61, %s63
    %p67 = scmp.eq.s32.totalorder %s13, 0
    %p68 = por %p66, %p67
    %p69 = scmp.ne.s32.totalorder %s61, %s63
    %p70 = scmp.eq.s32.totalorder %s18, 1
    %p71 = por %p69, %p70
    %p72 = scmp.ne.s32.totalorder %s63, %s64
    %p73 = scmp.eq.s32.totalorder %s18, 0
    %p74 = por %p72, %p73
    %p75 = scmp.ne.s32.totalorder %s63, %s64
    %p76 = scmp.eq.s32.totalorder %s19, 1
    %p77 = por %p75, %p76
    %p79 = scmp.ne.s32.totalorder %s64, %s78
    %p80 = scmp.eq.s32.totalorder %s19, 0
    %p81 = por %p79, %p80
    %s83 = sadd.s32 %s82, 1
    %p86 = scmp.eq.s32.totalorder %s13, 1
    %p87 = scmp.ne.s32.totalorder %s82, %s84
    %p88 = scmp.eq.s32.totalorder %s13, 0
    %p89 = por %p87, %p88
    %p90 = scmp.ne.s32.totalorder %s82, %s84
    %p91 = scmp.eq.s32.totalorder %s18, 1
    %p92 = por %p90, %p91
    %p93 = scmp.ne.s32.totalorder %s84, %s85
    %p94 = scmp.eq.s32.totalorder %s18, 0
    %p95 = por %p93, %p94
    %p96 = scmp.ne.s32.totalorder %s84, %s85
    %p97 = scmp.eq.s32.totalorder %s19, 1
    %p98 = por %p96, %p97
    %p100 = scmp.ne.s32.totalorder %s85, %s99
    %p101 = scmp.eq.s32.totalorder %s19, 0
    %p102 = por %p100, %p101
    %s104 = sadd.s32 %s103, 1
    %p107 = scmp.eq.s32.totalorder %s13, 1
    %p108 = scmp.ne.s32.totalorder %s103, %s105
    %p109 = scmp.eq.s32.totalorder %s13, 0
    %p110 = por %p108, %p109
    %p111 = scmp.ne.s32.totalorder %s103, %s105
    %p112 = scmp.eq.s32.totalorder %s18, 1
    %p113 = por %p111, %p112
    %p114 = scmp.ne.s32.totalorder %s105, %s106
    %p115 = scmp.eq.s32.totalorder %s18, 0
    %p116 = por %p114, %p115
    %p117 = scmp.ne.s32.totalorder %s105, %s106
    %p118 = scmp.eq.s32.totalorder %s19, 1
    %p119 = por %p117, %p118
    %p121 = scmp.ne.s32.totalorder %s106, %s120
    %p122 = scmp.eq.s32.totalorder %s19, 0
    %p123 = por %p121, %p122
    %s124 = ssub.s32 %s20, %s32
    %s125 = ssub.s32 %s21, %s28
    %s126 = sor.u32 %s124, %s125
    %p127 = scmp.eq.s32.totalorder %s126, 0
    %s129 = sadd.s32 %s128, 1
    %s130 = scalar_select %p127, %s128, %s129
    %p133 = pneg %p127
    %p134 = scmp.eq.s32.totalorder %s13, 1
    %p135 = por %p133, %p134
    %p136 = scmp.ne.s32.totalorder %s128, %s131
    %p137 = scmp.eq.s32.totalorder %s13, 0
    %p138 = por %p136, %p137
    %p139 = scmp.ne.s32.totalorder %s128, %s131
    %p140 = scmp.eq.s32.totalorder %s18, 1
    %p141 = por %p139, %p140
    %p142 = scmp.ne.s32.totalorder %s131, %s132
    %p143 = scmp.eq.s32.totalorder %s18, 0
    %p144 = por %p142, %p143
    %p145 = scmp.ne.s32.totalorder %s131, %s132
    %p146 = scmp.eq.s32.totalorder %s19, 1
    %p147 = por %p145, %p146
    %p149 = scmp.ne.s32.totalorder %s132, %s148
    %p150 = scmp.eq.s32.totalorder %s19, 0
    %p151 = por %p149, %p150
    %s152 = ssub.s32 %s20, %s32
    %s153 = ssub.s32 %s21, %s28
    %s154 = sor.u32 %s152, %s153
    %p155 = scmp.eq.s32.totalorder %s154, 0
    %s157 = sadd.s32 %s156, 1
    %s158 = scalar_select %p155, %s156, %s157
    %p161 = pneg %p155
    %p162 = scmp.eq.s32.totalorder %s13, 1
    %p163 = por %p161, %p162
    %p164 = scmp.ne.s32.totalorder %s156, %s159
    %p165 = scmp.eq.s32.totalorder %s13, 0
    %p166 = por %p164, %p165
    %p167 = scmp.ne.s32.totalorder %s156, %s159
    %p168 = scmp.eq.s32.totalorder %s18, 1
    %p169 = por %p167, %p168
    %p170 = scmp.ne.s32.totalorder %s159, %s160
    %p171 = scmp.eq.s32.totalorder %s18, 0
    %p172 = por %p170, %p171
    %p173 = scmp.ne.s32.totalorder %s159, %s160
    %p174 = scmp.eq.s32.totalorder %s19, 1
    %p175 = por %p173, %p174
    %p177 = scmp.ne.s32.totalorder %s160, %s176
    %p178 = scmp.eq.s32.totalorder %s19, 0
    %p179 = por %p177, %p178
    %s180 = ssub.s32 %s20, %s32
    %s181 = ssub.s32 %s21, %s28
    %s182 = sor.u32 %s180, %s181
    %p183 = scmp.eq.s32.totalorder %s182, 0
    %s185 = sadd.s32 %s184, 1
    %s186 = scalar_select %p183, %s184, %s185
    %p189 = pneg %p183
    %p190 = scmp.eq.s32.totalorder %s13, 1
    %p191 = por %p189, %p190
    %p192 = scmp.ne.s32.totalorder %s184, %s187
    %p193 = scmp.eq.s32.totalorder %s13, 0
    %p194 = por %p192, %p193
    %p195 = scmp.ne.s32.totalorder %s184, %s187
    %p196 = scmp.eq.s32.totalorder %s18, 1
    %p197 = por %p195, %p196
    %p198 = scmp.ne.s32.totalorder %s187, %s188
    %p199 = scmp.eq.s32.totalorder %s18, 0
    %p200 = por %p198, %p199
    %p201 = scmp.ne.s32.totalorder %s187, %s188
    %p202 = scmp.eq.s32.totalorder %s19, 1
    %p203 = por %p201, %p202
    %p205 = scmp.ne.s32.totalorder %s188, %s204
    %p206 = scmp.eq.s32.totalorder %s19, 0
    %p207 = por %p205, %p206
    %p208 = scmp.le.s32.totalorder 1, %s13
    %p209 = scmp.lt.s32.totalorder %s13, 3
    %p210 = pnand %p208, %p209
    %p211 = pneg %p210
    // Predicated region
    $region9: #{deform_conv_forward.2} parent=5 // pred_check
      _
    $region10: #{deform_conv_forward.2} parent=5 // pred_check_branch
      %213 = sbr.rel (%p210) target = $region12
    $region11: #{deform_conv_forward.2} parent=5 // pred_region
      %s214 = ssub.s32 %s13, 1
      // Predicated region
      $region13: #{deform_conv_forward.2} parent=11 // pred_check
        %p215 = pneg %p74
      $region14: #{deform_conv_forward.2} parent=11 // pred_check_branch
        %217 = sbr.rel (%p215) target = $region16
      $region15: #{deform_conv_forward.2} parent=11 // pred_region
        _
      $region16: #{deform_conv_forward.2} parent=11 // pred_fallthru
        _
      // Predicated region
      $region17: #{deform_conv_forward.2} parent=11 // pred_check
        %p218 = pneg %p95
      $region18: #{deform_conv_forward.2} parent=11 // pred_check_branch
        %220 = sbr.rel (%p218) target = $region20
      $region19: #{deform_conv_forward.2} parent=11 // pred_region
        _
      $region20: #{deform_conv_forward.2} parent=11 // pred_fallthru
        _
      // Predicated region
      $region21: #{deform_conv_forward.2} parent=11 // pred_check
        %p221 = pneg %p116
      $region22: #{deform_conv_forward.2} parent=11 // pred_check_branch
        %223 = sbr.rel (%p221) target = $region24
      $region23: #{deform_conv_forward.2} parent=11 // pred_region
        _
      $region24: #{deform_conv_forward.2} parent=11 // pred_fallthru
        _
    $region12: #{deform_conv_forward.2} parent=5 // pred_fallthru
      _
    %p224 = scmp.lt.s32.totalorder %s13, 2
    // Predicated region
    $region25: #{deform_conv_forward.2} parent=5 // pred_check
      %p225 = pneg %p224
    $region26: #{deform_conv_forward.2} parent=5 // pred_check_branch
      %227 = sbr.rel (%p225) target = $region28
    $region27: #{deform_conv_forward.2} parent=5 // pred_region
      // Predicated region
      $region29: #{deform_conv_forward.2} parent=27 // pred_check
        %p228 = pneg %p47
      $region30: #{deform_conv_forward.2} parent=27 // pred_check_branch
        %230 = sbr.rel (%p228) target = $region32
      $region31: #{deform_conv_forward.2} parent=27 // pred_region
        %p231 = scmp.lt.s32.totalorder %s20, 1
        %s232 = scalar_select %p231, %s20, 1
        %p233 = scmp.lt.s32.totalorder %s21, 0
        %s234 = scalar_select %p233, %s21, 0
        %s235 = smul.addr %s234, 3
        %s236 = smul.addr %s232, 3
        %s237 = sadd.s32 %s235, %s236
        %s238 = smul.addr %s237, 4
        %s239 = scalar_lea.vmem %s0, %s238
      $region32: #{deform_conv_forward.2} parent=27 // pred_fallthru
        _
    $region28: #{deform_conv_forward.2} parent=5 // pred_fallthru
      _
    %p240 = scmp.le.s32.totalorder 1, %s13
    %p241 = scmp.lt.s32.totalorder %s13, 3
    %p242 = pnand %p240, %p241
    %p243 = pneg %p242
    // Predicated region
    $region33: #{deform_conv_forward.2} parent=5 // pred_check
      _
    $region34: #{deform_conv_forward.2} parent=5 // pred_check_branch
      %245 = sbr.rel (%p242) target = $region36
    $region35: #{deform_conv_forward.2} parent=5 // pred_region
      %s246 = ssub.s32 %s13, 1
      %p247 = scmp.lt.s32.totalorder %s22, 1
      %s248 = scalar_select %p247, %s22, 1
      %p249 = scmp.lt.s32.totalorder %s23, 0
      %s250 = scalar_select %p249, %s23, 0
      %s251 = smul.addr %s250, 3
      %s252 = smul.addr %s248, 3
      %s253 = sadd.s32 %s251, %s252
      %s254 = smul.addr %s253, 4
      %s255 = scalar_lea.vmem %s0, %s254
      %p256 = pneg %p53
      %p257 = pneg %p50
      %p258 = pneg %p74
      %p259 = pneg %p71
      %p260 = pneg %p95
      %p261 = pneg %p92
      %p262 = pneg %p116
      %p263 = pneg %p113
      %p264 = pneg %p144
      %p265 = pneg %p141
      %s266 = smul.u32 2, %s23
      %p267 = scmp.lt.s32.totalorder %s22, 1
      %s268 = scalar_select %p267, %s22, 1
      %p269 = scmp.lt.s32.totalorder %s266, 1
      %s270 = scalar_select %p269, %s266, 1
      %s271 = smul.addr %s268, 2
      %s272 = sadd.s32 %s270, %s271
      %s273 = smul.addr %s272, 4
      %s274 = scalar_lea.vmem %s4, %s273
      %p275 = pneg %p172
      %p276 = pneg %p169
      %p277 = scmp.lt.s32.totalorder %s22, 1
      %s278 = scalar_select %p277, %s22, 1
      %p279 = scmp.lt.s32.totalorder %s23, 0
      %s280 = scalar_select %p279, %s23, 0
      %s281 = sadd.s32 %s280, %s278
      %s282 = smul.addr %s281, 8
      %s283 = scalar_lea.vmem %s5, %s282
      %p284 = pneg %p200
      %p285 = pneg %p197
      %p286 = scmp.lt.s32.totalorder %s22, 1
      %s287 = scalar_select %p286, %s22, 1
      %p288 = scmp.lt.s32.totalorder %s23, 0
      %s289 = scalar_select %p288, %s23, 0
      %s290 = sadd.s32 %s289, %s287
      %s291 = smul.addr %s290, 8
      %s292 = scalar_lea.vmem %s6, %s291
      %p293 = scmp.lt.s32.totalorder %s22, 1
      %s294 = scalar_select %p293, %s22, 1
      %p295 = scmp.lt.s32.totalorder %s23, 0
      %s296 = scalar_select %p295, %s23, 0
      %s297 = smul.addr %s296, 3
      %s298 = smul.addr %s294, 3
      %s299 = sadd.s32 %s297, %s298
      %s300 = smul.addr %s299, 4
      %s301 = scalar_lea.vmem %s0, %s300
      %s302 = smul.u32 2, %s23
      %p303 = scmp.lt.s32.totalorder %s22, 1
      %s304 = scalar_select %p303, %s22, 1
      %p305 = scmp.lt.s32.totalorder %s302, 1
      %s306 = scalar_select %p305, %s302, 1
      %s307 = smul.addr %s304, 2
      %s308 = sadd.s32 %s306, %s307
      %s309 = smul.addr %s308, 4
      %s310 = scalar_lea.vmem %s4, %s309
      %s311 = smul.u32 2, %s23
      %p312 = scmp.lt.s32.totalorder %s22, 1
      %s313 = scalar_select %p312, %s22, 1
      %p314 = scmp.lt.s32.totalorder %s23, 0
      %s315 = scalar_select %p314, %s23, 0
      %s316 = sadd.s32 %s315, %s313
      %s317 = smul.addr %s316, 8
      %s318 = scalar_lea.vmem %s5, %s317
      %p319 = scmp.lt.s32.totalorder %s22, 1
      %s320 = scalar_select %p319, %s22, 1
      %p321 = scmp.lt.s32.totalorder %s23, 0
      %s322 = scalar_select %p321, %s23, 0
      %s323 = sadd.s32 %s322, %s320
      %s324 = smul.addr %s323, 8
      %s325 = scalar_lea.vmem %s6, %s324
      %v327 = vld [vmem:[%s301] sm:$0xff]
      %v328 = vld [vmem:[%s301 + $0x8] sm:$0xf]
      %v330 = vcombine.high %v327, %v327
      %332 = vst [vmem:[#allocation2] sm:$0xf] %v327
      %333 = vst [vmem:[#allocation2 + $0x8] sm:$0xf] %v330
      %vm334 = vcmask 257024
      %335 = vst.msk [vmem:[#allocation2 + $0x10] sm:$0xf] %vm334, %v328
      %v336 = vld [vmem:[%s301] sm:$0xff]
      %v337 = vld [vmem:[%s301 + $0x8] sm:$0xf]
      %v340 = vcombine.low %v336, %v336
      %v341 = vcombine.low %v337, %v337
      %342 = vrot.lane.b32.xlu0 %v340, 127
      %v343 = vpop.permute.xlu0 %342
      %344 = vrot.lane.b32.xlu0 %v336, 127
      %v345 = vpop.permute.xlu0 %344
      %346 = vrot.lane.b32.xlu0 %v341, 127
      %v347 = vpop.permute.xlu0 %346
      %vm348 = vcmask 1039360
      %v349 = vsel %vm348, %v343, %v345
      %v350 = vsel %vm348, %v345, %v347
      %354 = vst [vmem:[#allocation2] sm:$0xf0] %v349
      %355 = vst [vmem:[#allocation2 + $0x8] sm:$0xf0] %v350
      %vm356 = vcmask 261124
      %357 = vst.msk [vmem:[#allocation2 + $0x10] sm:$0xf0] %vm356, %v347
      %v358 = vld [vmem:[%s301] sm:$0xff]
      %v359 = vld [vmem:[%s301 + $0x8] sm:$0xf]
      %v362 = vcombine.high %v358, %v358
      %363 = vrot.lane.b32.xlu0 %v358, 126
      %v364 = vpop.permute.xlu0 %363
      %365 = vrot.lane.b32.xlu0 %v362, 126
      %v366 = vpop.permute.xlu0 %365
      %367 = vrot.lane.b32.xlu0 %v359, 126
      %v368 = vpop.permute.xlu0 %367
      %vm369 = vcmask 1031168
      %v370 = vsel %vm369, %v364, %v366
      %v371 = vsel %vm369, %v366, %v368
      %375 = vst [vmem:[#allocation2 + $0x18] sm:$0xf] %v370
      %376 = vst [vmem:[#allocation2 + $0x20] sm:$0xf] %v371
      %377 = vst.msk [vmem:[#allocation2 + $0x28] sm:$0xf] %vm334, %v368
      %v378 = vld [vmem:[%s301] sm:$0xff]
      %v379 = vld [vmem:[%s301 + $0x8] sm:$0xf]
      %v382 = vcombine.low %v378, %v378
      %v383 = vcombine.low %v379, %v379
      %384 = vrot.lane.b32.xlu0 %v382, 110
      %v385 = vpop.permute.xlu0 %384
      %386 = vrot.lane.b32.xlu0 %v378, 110
      %v387 = vpop.permute.xlu0 %386
      %388 = vrot.lane.b32.xlu0 %v383, 110
      %v389 = vpop.permute.xlu0 %388
      %vm390 = vcmask 900096
      %v391 = vsel %vm390, %v385, %v387
      %v392 = vsel %vm390, %v387, %v389
      %396 = vst [vmem:[#allocation2 + $0x18] sm:$0xf0] %v391
      %397 = vst [vmem:[#allocation2 + $0x20] sm:$0xf0] %v392
      %398 = vst.msk [vmem:[#allocation2 + $0x28] sm:$0xf0] %vm356, %v389
      %v399 = vld [vmem:[%s301] sm:$0xff]
      %v400 = vld [vmem:[%s301 + $0x8] sm:$0xf]
      %v403 = vcombine.high %v399, %v399
      %404 = vrot.lane.b32.xlu0 %v399, 109
      %v405 = vpop.permute.xlu0 %404
      %406 = vrot.lane.b32.xlu0 %v403, 109
      %v407 = vpop.permute.xlu0 %406
      %408 = vrot.lane.b32.xlu0 %v400, 109
      %v409 = vpop.permute.xlu0 %408
      %vm410 = vcmask 891904
      %v411 = vsel %vm410, %v405, %v407
      %v412 = vsel %vm410, %v407, %v409
      %416 = vst [vmem:[#allocation2 + $0x30] sm:$0xf] %v411
      %417 = vst [vmem:[#allocation2 + $0x38] sm:$0xf] %v412
      %418 = vst.msk [vmem:[#allocation2 + $0x40] sm:$0xf] %vm334, %v409
      %v419 = vld [vmem:[%s301] sm:$0xff]
      %v420 = vld [vmem:[%s301 + $0x8] sm:$0xf]
      %v423 = vcombine.low %v419, %v419
      %v424 = vcombine.low %v420, %v420
      %425 = vrot.lane.b32.xlu0 %v423, 108
      %v426 = vpop.permute.xlu0 %425
      %427 = vrot.lane.b32.xlu0 %v419, 108
      %v428 = vpop.permute.xlu0 %427
      %429 = vrot.lane.b32.xlu0 %v424, 108
      %v430 = vpop.permute.xlu0 %429
      %vm431 = vcmask 883712
      %v432 = vsel %vm431, %v426, %v428
      %v433 = vsel %vm431, %v428, %v430
      %437 = vst [vmem:[#allocation2 + $0x30] sm:$0xf0] %v432
      %438 = vst [vmem:[#allocation2 + $0x38] sm:$0xf0] %v433
      %439 = vst.msk [vmem:[#allocation2 + $0x40] sm:$0xf0] %vm356, %v430
      %v440 = vld [vmem:[%s301] sm:$0xff]
      %v441 = vld [vmem:[%s301 + $0x8] sm:$0xf]
      %v444 = vcombine.high %v440, %v440
      %445 = vrot.lane.b32.xlu0 %v440, 92
      %v446 = vpop.permute.xlu0 %445
      %447 = vrot.lane.b32.xlu0 %v444, 92
      %v448 = vpop.permute.xlu0 %447
      %449 = vrot.lane.b32.xlu0 %v441, 92
      %v450 = vpop.permute.xlu0 %449
      %vm451 = vcmask 752640
      %v452 = vsel %vm451, %v446, %v448
      %v453 = vsel %vm451, %v448, %v450
      %457 = vst [vmem:[#allocation2 + $0x48] sm:$0xf] %v452
      %458 = vst [vmem:[#allocation2 + $0x50] sm:$0xf] %v453
      %459 = vst.msk [vmem:[#allocation2 + $0x58] sm:$0xf] %vm334, %v450
      %v460 = vld [vmem:[%s301] sm:$0xff]
      %v461 = vld [vmem:[%s301 + $0x8] sm:$0xf]
      %v464 = vcombine.low %v460, %v460
      %v465 = vcombine.low %v461, %v461
      %466 = vrot.lane.b32.xlu0 %v464, 91
      %v467 = vpop.permute.xlu0 %466
      %468 = vrot.lane.b32.xlu0 %v460, 91
      %v469 = vpop.permute.xlu0 %468
      %470 = vrot.lane.b32.xlu0 %v465, 91
      %v471 = vpop.permute.xlu0 %470
      %vm472 = vcmask 744448
      %v473 = vsel %vm472, %v467, %v469
      %v474 = vsel %vm472, %v469, %v471
      %478 = vst [vmem:[#allocation2 + $0x48] sm:$0xf0] %v473
      %479 = vst [vmem:[#allocation2 + $0x50] sm:$0xf0] %v474
      %480 = vst.msk [vmem:[#allocation2 + $0x58] sm:$0xf0] %vm356, %v471
      %v481 = vld [vmem:[%s301] sm:$0xff]
      %v482 = vld [vmem:[%s301 + $0x8] sm:$0xf]
      %v485 = vcombine.high %v481, %v481
      %486 = vrot.lane.b32.xlu0 %v481, 90
      %v487 = vpop.permute.xlu0 %486
      %488 = vrot.lane.b32.xlu0 %v485, 90
      %v489 = vpop.permute.xlu0 %488
      %490 = vrot.lane.b32.xlu0 %v482, 90
      %v491 = vpop.permute.xlu0 %490
      %vm492 = vcmask 736256
      %v493 = vsel %vm492, %v487, %v489
      %v494 = vsel %vm492, %v489, %v491
      %498 = vst [vmem:[#allocation2 + $0x60] sm:$0xf] %v493
      %499 = vst [vmem:[#allocation2 + $0x68] sm:$0xf] %v494
      %500 = vst.msk [vmem:[#allocation2 + $0x70] sm:$0xf] %vm334, %v491
      %v501 = vld [vmem:[#allocation2] sm:$0xff]
      %v502 = vld [vmem:[#allocation2 + $0x8] sm:$0xff]
      %v503 = vld [vmem:[#allocation2 + $0x10] sm:$0xff]
      %v504 = vld [vmem:[#allocation2 + $0x18] sm:$0xff]
      %v505 = vld [vmem:[#allocation2 + $0x20] sm:$0xff]
      %v506 = vld [vmem:[#allocation2 + $0x28] sm:$0xff]
      %v507 = vld [vmem:[#allocation2 + $0x30] sm:$0xff]
      %v508 = vld [vmem:[#allocation2 + $0x38] sm:$0xff]
      %v509 = vld [vmem:[#allocation2 + $0x40] sm:$0xff]
      %v510 = vld [vmem:[#allocation2 + $0x48] sm:$0xff]
      %v511 = vld [vmem:[#allocation2 + $0x50] sm:$0xff]
      %v512 = vld [vmem:[#allocation2 + $0x58] sm:$0xff]
      %v513 = vld [vmem:[#allocation2 + $0x60] sm:$0xf]
      %v514 = vld [vmem:[#allocation2 + $0x68] sm:$0xf]
      %v515 = vld [vmem:[#allocation2 + $0x70] sm:$0xf]
      %v516 = vpack.c.bf16 %v504, %v501
      %v517 = vpack.c.bf16 %v505, %v502
      %v518 = vpack.c.bf16 %v506, %v503
      %v519 = vpack.c.bf16 %v510, %v507
      %v520 = vpack.c.bf16 %v511, %v508
      %v521 = vpack.c.bf16 %v512, %v509
      %v522 = vpack.c.bf16 %v513, %v513
      %v523 = vpack.c.bf16 %v514, %v514
      %v524 = vpack.c.bf16 %v515, %v515
      %v525 = vld [vmem:[%s1] sm:$0xf]
      %v526 = vld [vmem:[%s2] sm:$0xff]
      %528 = vset.pattern.permute.xlu0 0
      %529 = vperm.xlu0 %528, %v526
      %v530 = vpop.permute.xlu0 %529
      %vm532 = vcmask 293888
      %v534 = vsel %vm532, %v525, 0
      %vm536 = vcmask 1041408
      %v538 = vsel %vm536, %v522, 0
      %v541 = vsel %vm536, %v523, 0
      %v544 = vsel %vm536, %v524, 0
      %546 = vmatprep.subr.bf16.mxu0 %v517
      %547 = vmatpush1.bf16.msra.mxu0 %v516
      %548 = vmatprep.subr.bf16.mxu0 %v520
      %549 = vmatpush1.bf16.msra.mxu0 %v519
      %550 = vmatprep.subr.bf16.mxu0 %v541
      %551 = vmatpush1.bf16.msra.mxu0 %v538
      %552 = vmatprep.subr.bf16.mxu0 0
      %553 = vmatpush1.bf16.msra.mxu0 0
      %554 = vmatprep.subr.bf16.mxu0 0
      %555 = vmatpush1.bf16.msra.mxu0 0
      %556 = vmatprep.subr.bf16.mxu0 0
      %557 = vmatpush1.bf16.msra.mxu0 0
      %558 = vmatprep.subr.bf16.mxu0 0
      %559 = vmatpush1.bf16.msra.mxu0 0
      %560 = vmatprep.subr.bf16.mxu0 0
      %561 = vmatpush1.bf16.msra.mxu0 0
      %562 = vmatprep.subr.bf16.mxu0 0
      %563 = vmatpush1.bf16.msra.mxu0 0
      %564 = vmatprep.subr.bf16.mxu0 0
      %565 = vmatpush1.bf16.msra.mxu0 0
      %566 = vmatprep.subr.bf16.mxu0 0
      %567 = vmatpush1.bf16.msra.mxu0 0
      %568 = vmatprep.subr.bf16.mxu0 0
      %569 = vmatpush1.bf16.msra.mxu0 0
      %570 = vmatprep.subr.bf16.mxu0 0
      %571 = vmatpush1.bf16.msra.mxu0 0
      %572 = vmatprep.subr.bf16.mxu0 0
      %573 = vmatpush1.bf16.msra.mxu0 0
      %574 = vmatprep.subr.bf16.mxu0 0
      %575 = vmatpush1.bf16.msra.mxu0 0
      %576 = vmatprep.subr.bf16.mxu0 0
      %577 = vmatpush1.bf16.msra.mxu0 0
      %578 = vmatprep.mubr.bf16.mxu0 0
      %579 = vmatmul.mubr.bf16.gmra.mrb[0].mxu0 %v534
      %v580 = vpop.f32.mrb[0].mxu0
      %v581 = vadd.f32 %v530, %v580
      %v582 = vpop.f32.mrb[0].mxu0
      %v583 = vadd.f32 %v530, %v582
      %v584 = vpop.f32.mrb[0].mxu0
      %v585 = vpop.f32.mrb[0].mxu0
      %586 = vdwg.mxu0
      %587 = vmatprep.subr.bf16.mxu0 0
      %588 = vmatpush1.bf16.msra.mxu0 %v518
      %589 = vmatprep.subr.bf16.mxu0 0
      %590 = vmatpush1.bf16.msra.mxu0 %v521
      %591 = vmatprep.subr.bf16.mxu0 0
      %592 = vmatpush1.bf16.msra.mxu0 %v544
      %593 = vmatprep.subr.bf16.mxu0 0
      %594 = vmatpush1.bf16.msra.mxu0 0
      %595 = vmatprep.subr.bf16.mxu0 0
      %596 = vmatpush1.bf16.msra.mxu0 0
      %597 = vmatprep.subr.bf16.mxu0 0
      %598 = vmatpush1.bf16.msra.mxu0 0
      %599 = vmatprep.subr.bf16.mxu0 0
      %600 = vmatpush1.bf16.msra.mxu0 0
      %601 = vmatprep.subr.bf16.mxu0 0
      %602 = vmatpush1.bf16.msra.mxu0 0
      %603 = vmatprep.subr.bf16.mxu0 0
      %604 = vmatpush1.bf16.msra.mxu0 0
      %605 = vmatprep.subr.bf16.mxu0 0
      %606 = vmatpush1.bf16.msra.mxu0 0
      %607 = vmatprep.subr.bf16.mxu0 0
      %608 = vmatpush1.bf16.msra.mxu0 0
      %609 = vmatprep.subr.bf16.mxu0 0
      %610 = vmatpush1.bf16.msra.mxu0 0
      %611 = vmatprep.subr.bf16.mxu0 0
      %612 = vmatpush1.bf16.msra.mxu0 0
      %613 = vmatprep.subr.bf16.mxu0 0
      %614 = vmatpush1.bf16.msra.mxu0 0
      %615 = vmatprep.subr.bf16.mxu0 0
      %616 = vmatpush1.bf16.msra.mxu0 0
      %617 = vmatprep.subr.bf16.mxu0 0
      %618 = vmatpush1.bf16.msra.mxu0 0
      %619 = vmatprep.mubr.bf16.mxu0 0
      %620 = vmatmul.mubr.bf16.gmra.mrb[0].mxu0 %v534
      %v621 = vpop.f32.mrb[0].mxu0
      %v622 = vadd.f32 %v530, %v621
      %v623 = vpop.f32.mrb[0].mxu0
      %v624 = vpop.f32.mrb[0].mxu0
      %v625 = vpop.f32.mrb[0].mxu0
      %626 = vdwg.mxu0
      %v627 = vpack.c.bf16 %v581, %v581
      %v629 = vunpack.c.l.b16 %v627
      %v630 = vpack.c.b16 %v629, %v629
      %631 = vrot.lane.b32.xlu0 %v630, 127
      %v632 = vpop.permute.xlu0 %631
      %vm634 = vcmask 125952
      %635 = vst.msk [vmem:[%s310] sm:$0xf] %vm634, %v632
      %636 = vrot.lane.b32.xlu0 %v630, 125
      %v637 = vpop.permute.xlu0 %636
      %vm639 = vcmask 257152
      %640 = vst.msk [vmem:[%s310] sm:$0xf] %vm639, %v637
      %641 = vrot.lane.b32.xlu0 %v630, 123
      %v642 = vpop.permute.xlu0 %641
      %vm644 = vcmask 388352
      %645 = vst.msk [vmem:[%s310] sm:$0xf] %vm644, %v642
      %646 = vrot.lane.b32.xlu0 %v630, 121
      %v647 = vpop.permute.xlu0 %646
      %vm649 = vcmask 519552
      %650 = vst.msk [vmem:[%s310] sm:$0xf] %vm649, %v647
      %651 = vrot.lane.b32.xlu0 %v630, 119
      %v652 = vpop.permute.xlu0 %651
      %vm654 = vcmask 650752
      %655 = vst.msk [vmem:[%s310] sm:$0xf] %vm654, %v652
      %656 = vrot.lane.b32.xlu0 %v630, 117
      %v657 = vpop.permute.xlu0 %656
      %vm659 = vcmask 781952
      %660 = vst.msk [vmem:[%s310] sm:$0xf] %vm659, %v657
      %661 = vrot.lane.b32.xlu0 %v630, 115
      %v662 = vpop.permute.xlu0 %661
      %vm664 = vcmask 913152
      %665 = vst.msk [vmem:[%s310] sm:$0xf] %vm664, %v662
      %v666 = vpack.c.bf16 %v583, %v583
      %v668 = vunpack.c.l.b16 %v666
      %v669 = vpack.c.b16 %v668, %v629
      %670 = vrot.lane.b32.xlu0 %v669, 113
      %v671 = vpop.permute.xlu0 %670
      %v672 = vrot.slane %v671, 4
      %vm673 = vcmask 924672
      %v674 = vsel %vm673, %v671, %v672
      %vm676 = vcmask 1044352
      %677 = vst.msk [vmem:[%s310] sm:$0xf] %vm676, %v674
      %v678 = vpack.c.b16 %v668, %v668
      %679 = vrot.lane.b32.xlu0 %v678, 111
      %v680 = vpop.permute.xlu0 %679
      %682 = vst.msk [vmem:[%s310 + $0x4] sm:$0xf] %vm634, %v680
      %683 = vrot.lane.b32.xlu0 %v678, 109
      %v684 = vpop.permute.xlu0 %683
      %686 = vst.msk [vmem:[%s310 + $0x4] sm:$0xf] %vm639, %v684
      %687 = vrot.lane.b32.xlu0 %v678, 107
      %v688 = vpop.permute.xlu0 %687
      %690 = vst.msk [vmem:[%s310 + $0x4] sm:$0xf] %vm644, %v688
      %691 = vrot.lane.b32.xlu0 %v678, 105
      %v692 = vpop.permute.xlu0 %691
      %694 = vst.msk [vmem:[%s310 + $0x4] sm:$0xf] %vm649, %v692
      %695 = vrot.lane.b32.xlu0 %v678, 103
      %v696 = vpop.permute.xlu0 %695
      %698 = vst.msk [vmem:[%s310 + $0x4] sm:$0xf] %vm654, %v696
      %699 = vrot.lane.b32.xlu0 %v678, 101
      %v700 = vpop.permute.xlu0 %699
      %702 = vst.msk [vmem:[%s310 + $0x4] sm:$0xf] %vm659, %v700
      %v703 = vpack.c.bf16 %v622, %v622
      %v705 = vunpack.c.l.b16 %v703
      %v706 = vpack.c.b16 %v705, %v668
      %707 = vrot.lane.b32.xlu0 %v706, 99
      %v708 = vpop.permute.xlu0 %707
      %v709 = vrot.slane %v708, 4
      %vm710 = vcmask 809984
      %v711 = vsel %vm710, %v708, %v709
      %713 = vst.msk [vmem:[%s310 + $0x4] sm:$0xf] %vm664, %v711
      %v714 = vpack.c.b16 %v705, %v705
      %715 = vrot.lane.b32.xlu0 %v714, 97
      %v716 = vpop.permute.xlu0 %715
      %718 = vst.msk [vmem:[%s310 + $0x4] sm:$0xf] %vm676, %v716
      %v719 = vld [vmem:[%s3] sm:$0x7]
      %v721 = vlaneseq
      %v722 = vshrl.u32 %v721, 7
      %v723 = vsub.s32 0, %v722
      %v724 = vrot.slane %v719, %v723
      %v725 = vlaneseq
      %v726 = vshrl.u32 %v725, 7
      %v727 = vsub.s32 1, %v726
      %v728 = vrot.slane %v719, %v727
      %v729 = vlaneseq
      %v730 = vshrl.u32 %v729, 7
      %v731 = vsub.s32 2, %v730
      %v732 = vrot.slane %v719, %v731
      %v736 = vmul.f32 %v581, %v724
      %v737 = vmul.f32 %v583, %v728
      %v738 = vmul.f32 %v622, %v732
      %v739 = vadd.f32 %v736, %v737
      %vm740 = vcmask 261120
      %v741 = vsel %vm740, %v738, 0.0
      %v742 = vadd.f32 %v739, %v741
      %743 = vadd.xlane.f32.xlu0 %v742
      %v744 = vpop.xlane.xlu0 %743
      %vm745 = vcmask 7168
      %746 = vst.msk [vmem:[%s318] sm:$0xff] %vm745, %v744
      %v747 = vmul.f32 %v736, %v581
      %v748 = vmul.f32 %v737, %v583
      %v749 = vmul.f32 %v738, %v622
      %v750 = vadd.f32 %v747, %v748
      %v751 = vsel %vm740, %v749, 0.0
      %v752 = vadd.f32 %v750, %v751
      %753 = vadd.xlane.f32.xlu0 %v752
      %v754 = vpop.xlane.xlu0 %753
      %755 = vst.msk [vmem:[%s325] sm:$0xff] %vm745, %v754
      %s756 = smul.u32 2, %s23
      %p757 = scmp.lt.s32.totalorder %s22, 1
      %s758 = scalar_select %p757, %s22, 1
      %p759 = scmp.lt.s32.totalorder %s756, 1
      %s760 = scalar_select %p759, %s756, 1
      %s761 = smul.addr %s758, 2
      %s762 = sadd.s32 %s760, %s761
      %s763 = smul.addr %s762, 4
      %s764 = scalar_lea.vmem %s4, %s763
      %p765 = scmp.lt.s32.totalorder %s22, 1
      %s766 = scalar_select %p765, %s22, 1
      %p767 = scmp.lt.s32.totalorder %s23, 0
      %s768 = scalar_select %p767, %s23, 0
      %s769 = sadd.s32 %s768, %s766
      %s770 = smul.addr %s769, 8
      %s771 = scalar_lea.vmem %s5, %s770
      %p772 = scmp.lt.s32.totalorder %s22, 1
      %s773 = scalar_select %p772, %s22, 1
      %p774 = scmp.lt.s32.totalorder %s23, 0
      %s775 = scalar_select %p774, %s23, 0
      %s776 = sadd.s32 %s775, %s773
      %s777 = smul.addr %s776, 8
      %s778 = scalar_lea.vmem %s6, %s777
      // Predicated region
      $region37: #{deform_conv_forward.2} parent=35 // pred_check
        %p779 = pneg %p141
      $region38: #{deform_conv_forward.2} parent=35 // pred_check_branch
        %781 = sbr.rel (%p779) target = $region40
      $region39: #{deform_conv_forward.2} parent=35 // pred_region
        %s782 = smul.u32 2, %s23
      $region40: #{deform_conv_forward.2} parent=35 // pred_fallthru
        _
      // Predicated region
      $region41: #{deform_conv_forward.2} parent=35 // pred_check
        %p783 = pneg %p169
      $region42: #{deform_conv_forward.2} parent=35 // pred_check_branch
        %785 = sbr.rel (%p783) target = $region44
      $region43: #{deform_conv_forward.2} parent=35 // pred_region
        _
      $region44: #{deform_conv_forward.2} parent=35 // pred_fallthru
        _
      // Predicated region
      $region45: #{deform_conv_forward.2} parent=35 // pred_check
        %p786 = pneg %p197
      $region46: #{deform_conv_forward.2} parent=35 // pred_check_branch
        %788 = sbr.rel (%p786) target = $region48
      $region47: #{deform_conv_forward.2} parent=35 // pred_region
        _
      $region48: #{deform_conv_forward.2} parent=35 // pred_fallthru
        _
    $region36: #{deform_conv_forward.2} parent=5 // pred_fallthru
      _
    %p789 = scmp.le.s32.totalorder 2, %s13
    // Predicated region
    $region49: #{deform_conv_forward.2} parent=5 // pred_check
      %p790 = pneg %p789
    $region50: #{deform_conv_forward.2} parent=5 // pred_check_branch
      %792 = sbr.rel (%p790) target = $region52
    $region51: #{deform_conv_forward.2} parent=5 // pred_region
      %s793 = ssub.s32 %s13, 2
      // Predicated region
      $region53: #{deform_conv_forward.2} parent=51 // pred_check
        %p794 = pneg %p147
      $region54: #{deform_conv_forward.2} parent=51 // pred_check_branch
        %796 = sbr.rel (%p794) target = $region56
      $region55: #{deform_conv_forward.2} parent=51 // pred_region
        %s797 = smul.u32 2, %s25
        %p798 = scmp.lt.s32.totalorder %s24, 1
        %s799 = scalar_select %p798, %s24, 1
        %p800 = scmp.lt.s32.totalorder %s797, 1
        %s801 = scalar_select %p800, %s797, 1
        %s802 = smul.addr %s799, 2
        %s803 = sadd.s32 %s801, %s802
        %s804 = smul.addr %s803, 4
        %s805 = scalar_lea.vmem %s4, %s804
      $region56: #{deform_conv_forward.2} parent=51 // pred_fallthru
        _
      // Predicated region
      $region57: #{deform_conv_forward.2} parent=51 // pred_check
        %p806 = pneg %p175
      $region58: #{deform_conv_forward.2} parent=51 // pred_check_branch
        %808 = sbr.rel (%p806) target = $region60
      $region59: #{deform_conv_forward.2} parent=51 // pred_region
        %p809 = scmp.lt.s32.totalorder %s24, 1
        %s810 = scalar_select %p809, %s24, 1
        %p811 = scmp.lt.s32.totalorder %s25, 0
        %s812 = scalar_select %p811, %s25, 0
        %s813 = sadd.s32 %s812, %s810
        %s814 = smul.addr %s813, 8
        %s815 = scalar_lea.vmem %s5, %s814
      $region60: #{deform_conv_forward.2} parent=51 // pred_fallthru
        _
      // Predicated region
      $region61: #{deform_conv_forward.2} parent=51 // pred_check
        %p816 = pneg %p203
      $region62: #{deform_conv_forward.2} parent=51 // pred_check_branch
        %818 = sbr.rel (%p816) target = $region64
      $region63: #{deform_conv_forward.2} parent=51 // pred_region
        %p819 = scmp.lt.s32.totalorder %s24, 1
        %s820 = scalar_select %p819, %s24, 1
        %p821 = scmp.lt.s32.totalorder %s25, 0
        %s822 = scalar_select %p821, %s25, 0
        %s823 = sadd.s32 %s822, %s820
        %s824 = smul.addr %s823, 8
        %s825 = scalar_lea.vmem %s6, %s824
      $region64: #{deform_conv_forward.2} parent=51 // pred_fallthru
        _
    $region52: #{deform_conv_forward.2} parent=5 // pred_fallthru
      _
  $region6: #{deform_conv_forward.2} parent=0 // loop_footer
    %s17 = sadd.s32 1, %s13
  $region7: #{deform_conv_forward.2} parent=0 // loop_footer_branch
    %12 = sbr.rel target = $region3
  $region8: #{deform_conv_forward.2} parent=0 // loop_exit
    _

</llo_original>
